<compile_context>
chip_gen: v7x
topology: tpu7x:2x2x1
jax: 0.10.0
libtpu: 0.0.40
codegen_flags: <defaults>
</compile_context>

<pallas_src>
import math
import functools

import jax
import jax.numpy as jnp
from jax.experimental import pallas as pl
from jax.experimental.pallas import tpu as pltpu

# ----------------------------- configuration --------------------------------
BATCH = 2
SEQ = 8
EMBED = 32
NUM_HEADS = 4
HEAD_DIM = EMBED // NUM_HEADS
FFN = 64
LN_EPS = 1e-5
SCALING = HEAD_DIM ** (-0.5)

# rows of the packed small-vector array (width = max(FFN, EMBED))
ROW_BO, ROW_B1, ROW_B2, ROW_LN1G, ROW_LN1B, ROW_LN2G, ROW_LN2B = range(7)
VEC_ROWS = 8
VEC_W = max(FFN, EMBED)


# ------------------------------- kernel -------------------------------------
def bart_encoder_layer_kernel(
    x_ref, mask_ref, headp_ref, w1_ref, w2_ref, vecs_ref, o_ref,
    *, num_heads, head_dim, embed, ffn, ln_eps,
):
    seq = x_ref.shape[1]
    x = x_ref[0]            # (S, E)  -- this grid step's batch element
    mask = mask_ref[0, 0]   # (S, S)  -- per-batch additive attention mask

    # packed per-head attention params: [wqkv_h ; wo_h ; bqkv_h] along axis 1
    c3 = 3 * head_dim
    wqkv = headp_ref[:, :embed, :c3]                              # (H, E, 3*hd)
    wo = headp_ref[:, embed:embed + head_dim, :]                  # (H, hd, E) (lhm pre-folded)
    bqkv = headp_ref[:, embed + head_dim:embed + head_dim + 1, :c3]  # (H, 1, 3*hd)

    # head-major fused QKV projection: batched matmul, no relayout of heads
    # out of the lane dim.  Scaling (and lhm) are pre-folded into the weights.
    xh = jnp.broadcast_to(x[None, :, :], (num_heads, seq, embed))  # (H, S, E)
    qkv = jnp.einsum('hse,hec->hsc', xh, wqkv,
                     preferred_element_type=jnp.float32) + bqkv    # (H, S, 3*hd)
    q = qkv[..., :head_dim]                                        # (H, S, hd)
    k = qkv[..., head_dim:2 * head_dim]
    v = qkv[..., 2 * head_dim:]

    # attention (batch-leading einsums, softmax in f32 with exact divide)
    scores = jnp.einsum('hqd,hkd->hqk', q, k,
                        preferred_element_type=jnp.float32)        # (H, S, S)
    scores = scores + mask[None, :, :]
    scores = scores - jnp.max(scores, axis=-1, keepdims=True)
    p = jnp.exp(scores)
    p = p / jnp.sum(p, axis=-1, keepdims=True)

    ctx = jnp.einsum('hqk,hkd->hqd', p, v,
                     preferred_element_type=jnp.float32)           # (H, S, hd)
    # output projection against the head-split wo, then a cheap sum over the
    # leading head axis (plain vreg adds) -- no concat / reshape of ctx.
    attn_h = jnp.einsum('hqd,hde->hqe', ctx, wo,
                        preferred_element_type=jnp.float32)        # (H, S, E)
    attn = jnp.sum(attn_h, axis=0) + vecs_ref[ROW_BO:ROW_BO + 1, :embed]

    # residual + LayerNorm 1
    h1 = x + attn
    mu = jnp.mean(h1, axis=-1, keepdims=True)
    var = jnp.mean((h1 - mu) ** 2, axis=-1, keepdims=True)
    h1n = ((h1 - mu) * jax.lax.rsqrt(var + ln_eps)
           * vecs_ref[ROW_LN1G:ROW_LN1G + 1, :embed]
           + vecs_ref[ROW_LN1B:ROW_LN1B + 1, :embed])

    # FFN: fc1 -> exact GELU -> fc2
    f = (jnp.dot(h1n, w1_ref[...], preferred_element_type=jnp.float32)
         + vecs_ref[ROW_B1:ROW_B1 + 1, :ffn])
    f = 0.5 * f * (1.0 + jax.lax.erf(f * (1.0 / math.sqrt(2.0))))  # exact gelu
    f2 = (jnp.dot(f, w2_ref[...], preferred_element_type=jnp.float32)
          + vecs_ref[ROW_B2:ROW_B2 + 1, :embed])

    # residual + LayerNorm 2
    h2 = h1n + f2
    mu2 = jnp.mean(h2, axis=-1, keepdims=True)
    var2 = jnp.mean((h2 - mu2) ** 2, axis=-1, keepdims=True)
    out = ((h2 - mu2) * jax.lax.rsqrt(var2 + ln_eps)
           * vecs_ref[ROW_LN2G:ROW_LN2G + 1, :embed]
           + vecs_ref[ROW_LN2B:ROW_LN2B + 1, :embed])

    # TODO(synk): torch.isinf/isnan global clamp skipped (fp16-overflow guard;
    # never triggers for finite fp32 inputs).
    o_ref[0] = out.astype(o_ref.dtype)


# ------------------------------ wrapper --------------------------------------
def bart_encoder_layer(x, attn_mask, layer_head_mask, params):
    B, S, E = x.shape
    H, hd = NUM_HEADS, HEAD_DIM

    # fold the 1/sqrt(hd) scaling into wq/bq, and layer_head_mask into the
    # rows of the output projection (mathematically identical to scaling the
    # softmaxed probs).
    wq = params["wq"] * SCALING
    bq = params["bq"] * SCALING
    lhm_rows = jnp.repeat(layer_head_mask.astype(jnp.float32), hd)[:, None]  # (E, 1)
    wo_scaled = params["wo"] * lhm_rows                                      # (E, E)

    # one packed per-head parameter slab: [wqkv_h ; wo_h ; bqkv_h]
    headp = jnp.zeros((H, E + hd + 1, E), dtype=jnp.float32)
    for h in range(H):
        cols = slice(h * hd, (h + 1) * hd)
        wqkv_h = jnp.concatenate(
            [wq[:, cols], params["wk"][:, cols], params["wv"][:, cols]], axis=1)   # (E, 3*hd)
        bqkv_h = jnp.concatenate(
            [bq[:, cols], params["bk"][:, cols], params["bv"][:, cols]], axis=1)   # (1, 3*hd)
        headp = headp.at[h, :E, :3 * hd].set(wqkv_h)
        headp = headp.at[h, E:E + hd, :].set(wo_scaled[cols, :])
        headp = headp.at[h, E + hd, :3 * hd].set(bqkv_h[0])

    # all remaining small bias / LayerNorm vectors in one array (1 DMA)
    vecs = jnp.zeros((VEC_ROWS, VEC_W), dtype=jnp.float32)
    vecs = vecs.at[ROW_BO, :E].set(params["bo"].reshape(E))
    vecs = vecs.at[ROW_B1, :FFN].set(params["b1"].reshape(FFN))
    vecs = vecs.at[ROW_B2, :E].set(params["b2"].reshape(E))
    vecs = vecs.at[ROW_LN1G, :E].set(params["ln1_g"].reshape(E))
    vecs = vecs.at[ROW_LN1B, :E].set(params["ln1_b"].reshape(E))
    vecs = vecs.at[ROW_LN2G, :E].set(params["ln2_g"].reshape(E))
    vecs = vecs.at[ROW_LN2B, :E].set(params["ln2_b"].reshape(E))

    kernel = functools.partial(
        bart_encoder_layer_kernel,
        num_heads=H, head_dim=hd, embed=E, ffn=FFN, ln_eps=LN_EPS,
    )

    # grid over batch; "parallel" lets v7x shard batches across its 2 TCs.
    # Weights use constant index_maps so they are DMA'd once and stay resident.
    out = pl.pallas_call(
        kernel,
        out_shape=jax.ShapeDtypeStruct((B, S, E), jnp.float32),
        grid=(B,),
        in_specs=[
            pl.BlockSpec((1, S, E), lambda b: (b, 0, 0)),          # hidden states
            pl.BlockSpec((1, 1, S, S), lambda b: (b, 0, 0, 0)),    # additive mask
            pl.BlockSpec((H, E + hd + 1, E), lambda b: (0, 0, 0)),  # packed attn params
            pl.BlockSpec((E, FFN), lambda b: (0, 0)),              # fc1 weight
            pl.BlockSpec((FFN, E), lambda b: (0, 0)),              # fc2 weight
            pl.BlockSpec((VEC_ROWS, VEC_W), lambda b: (0, 0)),     # packed vectors
        ],
        out_specs=pl.BlockSpec((1, S, E), lambda b: (b, 0, 0)),
        compiler_params=pltpu.CompilerParams(
            dimension_semantics=("parallel",)),
    )(x, attn_mask, headp, params["w1"], params["w2"], vecs)

    return out


# --------------------------- pure-JAX reference ------------------------------
def reference(x, attn_mask, layer_head_mask, params):
    B, S, E = x.shape
    q = (x @ params["wq"] + params["bq"]) * SCALING
    k = x @ params["wk"] + params["bk"]
    v = x @ params["wv"] + params["bv"]

    def heads(t):  # (B,S,E) -> (B,H,S,hd)
        return t.reshape(B, S, NUM_HEADS, HEAD_DIM).transpose(0, 2, 1, 3)

    qh, kh, vh = heads(q), heads(k), heads(v)
    scores = jnp.einsum("bhqd,bhkd->bhqk", qh, kh) + attn_mask  # (B,H,S,S)
    p = jax.nn.softmax(scores, axis=-1)
    p = p * layer_head_mask.reshape(1, NUM_HEADS, 1, 1)
    attn = jnp.einsum("bhqk,bhkd->bhqd", p, vh)
    attn = attn.transpose(0, 2, 1, 3).reshape(B, S, E)
    attn = attn @ params["wo"] + params["bo"]

    def layer_norm(h, g, b):
        mu = jnp.mean(h, axis=-1, keepdims=True)
        var = jnp.mean((h - mu) ** 2, axis=-1, keepdims=True)
        return (h - mu) * jax.lax.rsqrt(var + LN_EPS) * g + b

    h1 = layer_norm(x + attn, params["ln1_g"], params["ln1_b"])
    f = h1 @ params["w1"] + params["b1"]
    f = 0.5 * f * (1.0 + jax.lax.erf(f / math.sqrt(2.0)))
    f = f @ params["w2"] + params["b2"]
    return layer_norm(h1 + f, params["ln2_g"], params["ln2_b"])


# --------------------------------- main ---------------------------------------
if __name__ == "__main__":
    key = jax.random.PRNGKey(0)
    keys = jax.random.split(key, 20)

    def w(k, shape, scale=0.05):
        return (scale * jax.random.normal(k, shape)).astype(jnp.float32)

    # nn.Linear stores (out,in); weights are pre-transposed to (in,out) so the
    # kernel computes x @ W.
    params = {
        "wq": w(keys[0], (EMBED, EMBED)), "bq": w(keys[1], (1, EMBED)),
        "wk": w(keys[2], (EMBED, EMBED)), "bk": w(keys[3], (1, EMBED)),
        "wv": w(keys[4], (EMBED, EMBED)), "bv": w(keys[5], (1, EMBED)),
        "wo": w(keys[6], (EMBED, EMBED)), "bo": w(keys[7], (1, EMBED)),
        "ln1_g": 1.0 + w(keys[8], (1, EMBED)), "ln1_b": w(keys[9], (1, EMBED)),
        "w1": w(keys[10], (EMBED, FFN)), "b1": w(keys[11], (1, FFN)),
        "w2": w(keys[12], (FFN, EMBED)), "b2": w(keys[13], (1, EMBED)),
        "ln2_g": 1.0 + w(keys[14], (1, EMBED)), "ln2_b": w(keys[15], (1, EMBED)),
    }

    x = jax.random.normal(keys[16], (BATCH, SEQ, EMBED), dtype=jnp.float32)

    # additive attention mask: batch 0 sees all 8 tokens, batch 1 only first 6
    src_valid = jnp.array([SEQ, 6])
    pos = jnp.arange(SEQ)
    attn_mask = jnp.where(pos[None, :] < src_valid[:, None], 0.0, -1e9)
    attn_mask = attn_mask[:, None, None, :].astype(jnp.float32)
    attn_mask = jnp.broadcast_to(attn_mask, (BATCH, 1, SEQ, SEQ))

    layer_head_mask = jnp.array([1.0, 0.5, 1.0, 0.0], dtype=jnp.float32)

    out = bart_encoder_layer(x, attn_mask, layer_head_mask, params)
    out = jax.block_until_ready(out)

    ref = reference(x, attn_mask, layer_head_mask, params)
    assert out.shape == (BATCH, SEQ, EMBED)
    assert jnp.allclose(out, ref, atol=1e-4, rtol=1e-4), (
        f"max abs diff {jnp.max(jnp.abs(out - ref))}")

    print("KERNEL_OK")
</pallas_src>

<mosaic_0001>
module attributes {stable_mosaic.version = 11 : i64} {
  func.func @bart_encoder_layer_kernel(%arg0: i32, %arg1: memref<1x8x32xf32, #tpu.memory_space<vmem>>, %arg2: memref<1x1x8x8xf32, #tpu.memory_space<vmem>>, %arg3: memref<4x41x32xf32, #tpu.memory_space<vmem>>, %arg4: memref<32x64xf32, #tpu.memory_space<vmem>>, %arg5: memref<64x32xf32, #tpu.memory_space<vmem>>, %arg6: memref<8x64xf32, #tpu.memory_space<vmem>>, %arg7: memref<1x8x32xf32, #tpu.memory_space<vmem>>) attributes {dimension_semantics = [#tpu.dimension_semantics<parallel>], iteration_bounds = array<i64: 2>, scalar_prefetch = 0 : i64, scratch_operands = 0 : i64, tpu.core_type = #tpu.core_type<tc>, window_params = [{transform_indices = @transform_0, window_bounds = array<i64: 1, 8, 32>}, {transform_indices = @transform_1, window_bounds = array<i64: 1, 1, 8, 8>}, {pipeline_mode = #tpu.pipeline_mode<synchronous>, transform_indices = @transform_2, window_bounds = array<i64: 4, 41, 32>}, {pipeline_mode = #tpu.pipeline_mode<synchronous>, transform_indices = @transform_3, window_bounds = array<i64: 32, 64>}, {pipeline_mode = #tpu.pipeline_mode<synchronous>, transform_indices = @transform_4, window_bounds = array<i64: 64, 32>}, {pipeline_mode = #tpu.pipeline_mode<synchronous>, transform_indices = @transform_5, window_bounds = array<i64: 8, 64>}, {transform_indices = @transform_6, window_bounds = array<i64: 1, 8, 32>}]} {
    %c0 = arith.constant 0 : index
    %c0_0 = arith.constant 0 : index
    %c0_1 = arith.constant 0 : index
    %0 = vector.load %arg1[%c0, %c0_0, %c0_1] : memref<1x8x32xf32, #tpu.memory_space<vmem>>, vector<1x8x32xf32>
    %1 = vector.shape_cast %0 : vector<1x8x32xf32> to vector<8x32xf32>
    %c0_2 = arith.constant 0 : index
    %c0_3 = arith.constant 0 : index
    %c0_4 = arith.constant 0 : index
    %c0_5 = arith.constant 0 : index
    %2 = vector.load %arg2[%c0_2, %c0_3, %c0_4, %c0_5] : memref<1x1x8x8xf32, #tpu.memory_space<vmem>>, vector<1x1x8x8xf32>
    %3 = vector.shape_cast %2 : vector<1x1x8x8xf32> to vector<8x8xf32>
    %c0_6 = arith.constant 0 : index
    %c0_7 = arith.constant 0 : index
    %c0_8 = arith.constant 0 : index
    %4 = vector.load %arg3[%c0_6, %c0_7, %c0_8] : memref<4x41x32xf32, #tpu.memory_space<vmem>>, vector<4x32x24xf32>
    %c0_9 = arith.constant 0 : index
    %c32 = arith.constant 32 : index
    %c0_10 = arith.constant 0 : index
    %5 = vector.load %arg3[%c0_9, %c32, %c0_10] : memref<4x41x32xf32, #tpu.memory_space<vmem>>, vector<4x8x32xf32>
    %c0_11 = arith.constant 0 : index
    %c40 = arith.constant 40 : index
    %c0_12 = arith.constant 0 : index
    %6 = vector.load %arg3[%c0_11, %c40, %c0_12] : memref<4x41x32xf32, #tpu.memory_space<vmem>>, vector<4x1x24xf32>
    %7 = vector.shape_cast %1 : vector<8x32xf32> to vector<1x8x32xf32>
    %8 = vector.shape_cast %7 : vector<1x8x32xf32> to vector<1x8x32xf32>
    %9 = vector.broadcast %8 : vector<1x8x32xf32> to vector<4x8x32xf32>
    "tpu.trace_start"() <{level = 10 : i32, message = "hse,hec->hsc"}> : () -> ()
    %cst = arith.constant dense<0.000000e+00> : vector<4x8x24xf32>
    %10 = tpu.matmul %9, %4, %cst {dimension_numbers = #tpu.dot_dimension_numbers<[2], [1], [1], [2], [0, 0, 0, 1, 1, 2], [0], [0]>} : vector<4x8x32xf32>, vector<4x32x24xf32>, vector<4x8x24xf32> -> vector<4x8x24xf32>
    "tpu.trace_stop"() : () -> ()
    %11 = vector.broadcast %6 : vector<4x1x24xf32> to vector<4x8x24xf32>
    %12 = arith.addf %10, %11 : vector<4x8x24xf32>
    %13 = vector.extract_strided_slice %12 {offsets = [0, 0, 0], sizes = [4, 8, 8], strides = [1, 1, 1]} : vector<4x8x24xf32> to vector<4x8x8xf32>
    %14 = vector.extract_strided_slice %12 {offsets = [0, 0, 8], sizes = [4, 8, 8], strides = [1, 1, 1]} : vector<4x8x24xf32> to vector<4x8x8xf32>
    %15 = vector.extract_strided_slice %12 {offsets = [0, 0, 16], sizes = [4, 8, 8], strides = [1, 1, 1]} : vector<4x8x24xf32> to vector<4x8x8xf32>
    "tpu.trace_start"() <{level = 10 : i32, message = "hqd,hkd->hqk"}> : () -> ()
    %cst_13 = arith.constant dense<0.000000e+00> : vector<4x8x8xf32>
    %16 = tpu.matmul %13, %14, %cst_13 {dimension_numbers = #tpu.dot_dimension_numbers<[2], [2], [1], [1], [0, 0, 0, 1, 1, 1], [0], [0]>} : vector<4x8x8xf32>, vector<4x8x8xf32>, vector<4x8x8xf32> -> vector<4x8x8xf32>
    "tpu.trace_stop"() : () -> ()
    %17 = vector.shape_cast %3 : vector<8x8xf32> to vector<1x8x8xf32>
    %18 = vector.broadcast %17 : vector<1x8x8xf32> to vector<4x8x8xf32>
    %19 = arith.addf %16, %18 : vector<4x8x8xf32>
    %cst_14 = arith.constant dense<0xFF800000> : vector<4x8xf32>
    %20 = vector.multi_reduction <maximumf>, %19, %cst_14 [2] : vector<4x8x8xf32> to vector<4x8xf32>
    %21 = vector.shape_cast %20 : vector<4x8xf32> to vector<4x8x1xf32>
    %22 = vector.broadcast %21 : vector<4x8x1xf32> to vector<4x8x8xf32>
    %23 = arith.subf %19, %22 : vector<4x8x8xf32>
    %24 = math.exp %23 : vector<4x8x8xf32>
    %cst_15 = arith.constant dense<0.000000e+00> : vector<4x8xf32>
    %25 = vector.multi_reduction <add>, %24, %cst_15 [2] : vector<4x8x8xf32> to vector<4x8xf32>
    %26 = vector.shape_cast %25 : vector<4x8xf32> to vector<4x8x1xf32>
    %27 = vector.broadcast %26 : vector<4x8x1xf32> to vector<4x8x8xf32>
    %28 = arith.divf %24, %27 : vector<4x8x8xf32>
    "tpu.trace_start"() <{level = 10 : i32, message = "hqk,hkd->hqd"}> : () -> ()
    %cst_16 = arith.constant dense<0.000000e+00> : vector<4x8x8xf32>
    %29 = tpu.matmul %28, %15, %cst_16 {dimension_numbers = #tpu.dot_dimension_numbers<[2], [1], [1], [2], [0, 0, 0, 1, 1, 2], [0], [0]>} : vector<4x8x8xf32>, vector<4x8x8xf32>, vector<4x8x8xf32> -> vector<4x8x8xf32>
    "tpu.trace_stop"() : () -> ()
    "tpu.trace_start"() <{level = 10 : i32, message = "hqd,hde->hqe"}> : () -> ()
    %cst_17 = arith.constant dense<0.000000e+00> : vector<4x8x32xf32>
    %30 = tpu.matmul %29, %5, %cst_17 {dimension_numbers = #tpu.dot_dimension_numbers<[2], [1], [1], [2], [0, 0, 0, 1, 1, 2], [0], [0]>} : vector<4x8x8xf32>, vector<4x8x32xf32>, vector<4x8x32xf32> -> vector<4x8x32xf32>
    "tpu.trace_stop"() : () -> ()
    %cst_18 = arith.constant dense<0.000000e+00> : vector<8x32xf32>
    %31 = vector.multi_reduction <add>, %30, %cst_18 [0] : vector<4x8x32xf32> to vector<8x32xf32>
    %c0_19 = arith.constant 0 : index
    %c0_20 = arith.constant 0 : index
    %32 = vector.load %arg6[%c0_19, %c0_20] : memref<8x64xf32, #tpu.memory_space<vmem>>, vector<1x32xf32>
    %33 = vector.broadcast %32 : vector<1x32xf32> to vector<8x32xf32>
    %34 = arith.addf %31, %33 : vector<8x32xf32>
    %35 = arith.addf %1, %34 : vector<8x32xf32>
    %cst_21 = arith.constant dense<0.000000e+00> : vector<8xf32>
    %36 = vector.multi_reduction <add>, %35, %cst_21 [1] : vector<8x32xf32> to vector<8xf32>
    %37 = vector.shape_cast %36 : vector<8xf32> to vector<8x1xf32>
    %cst_22 = arith.constant 3.200000e+01 : f32
    %38 = vector.broadcast %cst_22 : f32 to vector<8x1xf32>
    %39 = arith.divf %37, %38 : vector<8x1xf32>
    %40 = vector.broadcast %39 : vector<8x1xf32> to vector<8x32xf32>
    %41 = arith.subf %35, %40 : vector<8x32xf32>
    %42 = arith.mulf %41, %41 : vector<8x32xf32>
    %cst_23 = arith.constant dense<0.000000e+00> : vector<8xf32>
    %43 = vector.multi_reduction <add>, %42, %cst_23 [1] : vector<8x32xf32> to vector<8xf32>
    %44 = vector.shape_cast %43 : vector<8xf32> to vector<8x1xf32>
    %cst_24 = arith.constant 3.200000e+01 : f32
    %45 = vector.broadcast %cst_24 : f32 to vector<8x1xf32>
    %46 = arith.divf %44, %45 : vector<8x1xf32>
    %47 = vector.broadcast %39 : vector<8x1xf32> to vector<8x32xf32>
    %48 = arith.subf %35, %47 : vector<8x32xf32>
    %cst_25 = arith.constant 9.99999974E-6 : f32
    %49 = vector.broadcast %cst_25 : f32 to vector<8x1xf32>
    %50 = arith.addf %46, %49 : vector<8x1xf32>
    %51 = math.rsqrt %50 : vector<8x1xf32>
    %52 = vector.broadcast %51 : vector<8x1xf32> to vector<8x32xf32>
    %53 = arith.mulf %48, %52 : vector<8x32xf32>
    %c3 = arith.constant 3 : index
    %c0_26 = arith.constant 0 : index
    %54 = vector.load %arg6[%c3, %c0_26] : memref<8x64xf32, #tpu.memory_space<vmem>>, vector<1x32xf32>
    %55 = vector.broadcast %54 : vector<1x32xf32> to vector<8x32xf32>
    %56 = arith.mulf %53, %55 : vector<8x32xf32>
    %c4 = arith.constant 4 : index
    %c0_27 = arith.constant 0 : index
    %57 = vector.load %arg6[%c4, %c0_27] : memref<8x64xf32, #tpu.memory_space<vmem>>, vector<1x32xf32>
    %58 = vector.broadcast %57 : vector<1x32xf32> to vector<8x32xf32>
    %59 = arith.addf %56, %58 : vector<8x32xf32>
    %c0_28 = arith.constant 0 : index
    %c0_29 = arith.constant 0 : index
    %60 = vector.load %arg4[%c0_28, %c0_29] : memref<32x64xf32, #tpu.memory_space<vmem>>, vector<32x64xf32>
    %cst_30 = arith.constant dense<0.000000e+00> : vector<8x64xf32>
    %61 = tpu.matmul %59, %60, %cst_30 {dimension_numbers = #tpu.dot_dimension_numbers<[1], [0], [0], [1], [0, 0, 1, 1], [], []>} : vector<8x32xf32>, vector<32x64xf32>, vector<8x64xf32> -> vector<8x64xf32>
    %c1 = arith.constant 1 : index
    %c0_31 = arith.constant 0 : index
    %62 = vector.load %arg6[%c1, %c0_31] : memref<8x64xf32, #tpu.memory_space<vmem>>, vector<1x64xf32>
    %63 = vector.broadcast %62 : vector<1x64xf32> to vector<8x64xf32>
    %64 = arith.addf %61, %63 : vector<8x64xf32>
    %cst_32 = arith.constant 5.000000e-01 : f32
    %65 = vector.broadcast %cst_32 : f32 to vector<8x64xf32>
    %66 = arith.mulf %65, %64 : vector<8x64xf32>
    %cst_33 = arith.constant 0.707106769 : f32
    %67 = vector.broadcast %cst_33 : f32 to vector<8x64xf32>
    %68 = arith.mulf %64, %67 : vector<8x64xf32>
    %69 = math.erf %68 : vector<8x64xf32>
    %cst_34 = arith.constant 1.000000e+00 : f32
    %70 = vector.broadcast %cst_34 : f32 to vector<8x64xf32>
    %71 = arith.addf %70, %69 : vector<8x64xf32>
    %72 = arith.mulf %66, %71 : vector<8x64xf32>
    %c0_35 = arith.constant 0 : index
    %c0_36 = arith.constant 0 : index
    %73 = vector.load %arg5[%c0_35, %c0_36] : memref<64x32xf32, #tpu.memory_space<vmem>>, vector<64x32xf32>
    %cst_37 = arith.constant dense<0.000000e+00> : vector<8x32xf32>
    %74 = tpu.matmul %72, %73, %cst_37 {dimension_numbers = #tpu.dot_dimension_numbers<[1], [0], [0], [1], [0, 0, 1, 1], [], []>} : vector<8x64xf32>, vector<64x32xf32>, vector<8x32xf32> -> vector<8x32xf32>
    %c2 = arith.constant 2 : index
    %c0_38 = arith.constant 0 : index
    %75 = vector.load %arg6[%c2, %c0_38] : memref<8x64xf32, #tpu.memory_space<vmem>>, vector<1x32xf32>
    %76 = vector.broadcast %75 : vector<1x32xf32> to vector<8x32xf32>
    %77 = arith.addf %74, %76 : vector<8x32xf32>
    %78 = arith.addf %59, %77 : vector<8x32xf32>
    %cst_39 = arith.constant dense<0.000000e+00> : vector<8xf32>
    %79 = vector.multi_reduction <add>, %78, %cst_39 [1] : vector<8x32xf32> to vector<8xf32>
    %80 = vector.shape_cast %79 : vector<8xf32> to vector<8x1xf32>
    %cst_40 = arith.constant 3.200000e+01 : f32
    %81 = vector.broadcast %cst_40 : f32 to vector<8x1xf32>
    %82 = arith.divf %80, %81 : vector<8x1xf32>
    %83 = vector.broadcast %82 : vector<8x1xf32> to vector<8x32xf32>
    %84 = arith.subf %78, %83 : vector<8x32xf32>
    %85 = arith.mulf %84, %84 : vector<8x32xf32>
    %cst_41 = arith.constant dense<0.000000e+00> : vector<8xf32>
    %86 = vector.multi_reduction <add>, %85, %cst_41 [1] : vector<8x32xf32> to vector<8xf32>
    %87 = vector.shape_cast %86 : vector<8xf32> to vector<8x1xf32>
    %cst_42 = arith.constant 3.200000e+01 : f32
    %88 = vector.broadcast %cst_42 : f32 to vector<8x1xf32>
    %89 = arith.divf %87, %88 : vector<8x1xf32>
    %90 = vector.broadcast %82 : vector<8x1xf32> to vector<8x32xf32>
    %91 = arith.subf %78, %90 : vector<8x32xf32>
    %cst_43 = arith.constant 9.99999974E-6 : f32
    %92 = vector.broadcast %cst_43 : f32 to vector<8x1xf32>
    %93 = arith.addf %89, %92 : vector<8x1xf32>
    %94 = math.rsqrt %93 : vector<8x1xf32>
    %95 = vector.broadcast %94 : vector<8x1xf32> to vector<8x32xf32>
    %96 = arith.mulf %91, %95 : vector<8x32xf32>
    %c5 = arith.constant 5 : index
    %c0_44 = arith.constant 0 : index
    %97 = vector.load %arg6[%c5, %c0_44] : memref<8x64xf32, #tpu.memory_space<vmem>>, vector<1x32xf32>
    %98 = vector.broadcast %97 : vector<1x32xf32> to vector<8x32xf32>
    %99 = arith.mulf %96, %98 : vector<8x32xf32>
    %c6 = arith.constant 6 : index
    %c0_45 = arith.constant 0 : index
    %100 = vector.load %arg6[%c6, %c0_45] : memref<8x64xf32, #tpu.memory_space<vmem>>, vector<1x32xf32>
    %101 = vector.broadcast %100 : vector<1x32xf32> to vector<8x32xf32>
    %102 = arith.addf %99, %101 : vector<8x32xf32>
    %c0_46 = arith.constant 0 : index
    %c0_47 = arith.constant 0 : index
    %c0_48 = arith.constant 0 : index
    %103 = vector.load %arg7[%c0_46, %c0_47, %c0_48] : memref<1x8x32xf32, #tpu.memory_space<vmem>>, vector<1x8x32xf32>
    %104 = vector.shape_cast %103 : vector<1x8x32xf32> to vector<8x32xf32>
    %105 = vector.shape_cast %102 : vector<8x32xf32> to vector<1x8x32xf32>
    tpu.vector_store %arg7[%c0_46, %c0_47, %c0_48], %105 {strides = array<i32>} : memref<1x8x32xf32, #tpu.memory_space<vmem>>, vector<1x8x32xf32>,
    return
  }
  func.func @transform_0(%arg0: i32) -> (i32, i32, i32) {
    %c0_i32 = arith.constant 0 : i32
    %c0_i32_0 = arith.constant 0 : i32
    %c0_i32_1 = arith.constant 0 : i32
    return %arg0, %c0_i32, %c0_i32_0 : i32, i32, i32
  }
  func.func @transform_1(%arg0: i32) -> (i32, i32, i32, i32) {
    %c0_i32 = arith.constant 0 : i32
    %c0_i32_0 = arith.constant 0 : i32
    %c0_i32_1 = arith.constant 0 : i32
    %c0_i32_2 = arith.constant 0 : i32
    return %arg0, %c0_i32, %c0_i32_0, %c0_i32_1 : i32, i32, i32, i32
  }
  func.func @transform_2(%arg0: i32) -> (i32, i32, i32) {
    %c0_i32 = arith.constant 0 : i32
    %c0_i32_0 = arith.constant 0 : i32
    %c0_i32_1 = arith.constant 0 : i32
    %c0_i32_2 = arith.constant 0 : i32
    return %c0_i32, %c0_i32_0, %c0_i32_1 : i32, i32, i32
  }
  func.func @transform_3(%arg0: i32) -> (i32, i32) {
    %c0_i32 = arith.constant 0 : i32
    %c0_i32_0 = arith.constant 0 : i32
    %c0_i32_1 = arith.constant 0 : i32
    return %c0_i32, %c0_i32_0 : i32, i32
  }
  func.func @transform_4(%arg0: i32) -> (i32, i32) {
    %c0_i32 = arith.constant 0 : i32
    %c0_i32_0 = arith.constant 0 : i32
    %c0_i32_1 = arith.constant 0 : i32
    return %c0_i32, %c0_i32_0 : i32, i32
  }
  func.func @transform_5(%arg0: i32) -> (i32, i32) {
    %c0_i32 = arith.constant 0 : i32
    %c0_i32_0 = arith.constant 0 : i32
    %c0_i32_1 = arith.constant 0 : i32
    return %c0_i32, %c0_i32_0 : i32, i32
  }
  func.func @transform_6(%arg0: i32) -> (i32, i32, i32) {
    %c0_i32 = arith.constant 0 : i32
    %c0_i32_0 = arith.constant 0 : i32
    %c0_i32_1 = arith.constant 0 : i32
    return %arg0, %c0_i32, %c0_i32_0 : i32, i32, i32
  }
}

</mosaic_0001>

<llo_original>
// kernel: tpu_custom_call.1
$region0: #{tpu_custom_call.1}
  #allocation0 [shape = 'u32[]', space=smem, size = 0x4, offset = 0x4, fixed_abs, tag = 'smem constant byte address 0x4 - core index']
  #allocation1 [shape = 'u32[144,128]{1,0:T(1,128)}', space=vmem, size = 0x12000, scoped, tag = 'internal scratch']
  %s0 = inlined_call_operand.vmem [shape: f32[2,8,32], index: 0, kind: input, shape index: {}]
  %s1 = inlined_call_operand.vmem [shape: f32[2,1,8,8], index: 1, kind: input, shape index: {}]
  %s2 = inlined_call_operand.vmem [shape: f32[4,41,32], index: 2, kind: input, shape index: {}]
  %s3 = inlined_call_operand.vmem [shape: f32[32,64], index: 3, kind: input, shape index: {}]
  %s4 = inlined_call_operand.vmem [shape: f32[64,32], index: 4, kind: input, shape index: {}]
  %s5 = inlined_call_operand.vmem [shape: f32[8,64], index: 5, kind: input, shape index: {}]
  %s6 = inlined_call_operand.hbm [shape: f32[2,8,32], index: 6, kind: output, shape index: {}]
  %s7 = sld [smem:[#allocation0]]
  $region57: #{tpu_custom_call.1} parent=0
    _
  %s9 = ssub.s32 1, %s7
  %s10 = scalar_select 0, %s9, %s7
  $region1: #{tpu_custom_call.1} parent=0
    #allocation2 [shape = 'u8[8192]{0}', space=vmem, size = 0x2000, scoped, tag = 'output window, operand 0']
    #allocation3 [shape = 's32[2]{0}', space=sflag, size = 0x8, scoped, tag = 'scoped memory for tpu_custom_call.1']
    %11 = vsyncpa [#allocation3], 0
    %s12 = scalar_lea.sflag [#allocation3], 1
    %13 = vsyncpa %s12, 0
    loop: start=0, step=1, limit=4
    $region2: #{tpu_custom_call.1} parent=1 // loop_pre_header
      _
    $region3: #{tpu_custom_call.1} parent=1 // loop_header
      %s15 = sphi 0, %s19
      %p16 = scmp.ge.s32.totalorder %s15, 4
      %s25 = sphi 0, %s27
      %s28 = sphi 0, %s25
      %s29 = sphi 0, %s28
      %s45 = sphi 0, %s29
      %s51 = sphi 0, %s53
      %s54 = sphi 0, %s51
      %s55 = sphi 0, %s54
      %s71 = sphi 0, %s55
      %s75 = sphi 0, %s75
      %s77 = sphi 0, %s75
      %s78 = sphi 0, %s77
      %s92 = sphi 0, %s78
      %s96 = sphi 0, %s96
      %s98 = sphi 0, %s96
      %s99 = sphi 0, %s98
      %s113 = sphi 0, %s99
      %s117 = sphi 0, %s117
      %s119 = sphi 0, %s117
      %s120 = sphi 0, %s119
      %s134 = sphi 0, %s120
      %s138 = sphi 0, %s138
      %s140 = sphi 0, %s138
      %s141 = sphi 0, %s140
      %s155 = sphi 0, %s141
      %s161 = sphi 0, %s163
      %s164 = sphi 0, %s161
      %s165 = sphi 0, %s164
      %s181 = sphi 0, %s165
    $region4: #{tpu_custom_call.1} parent=1 // loop_header_branch
      %18 = sbr.rel (%p16) target = $region8
    $region5: #{tpu_custom_call.1} parent=1 // loop_body
      %s20 = ssub.s32 %s15, 1
      %s21 = ssub.s32 %s15, 2
      %s22 = sadd.s32 %s15, 1
      %s23 = ssub.s32 %s15, %s22
      %p24 = scmp.eq.s32.totalorder %s23, 0
      %s26 = sadd.s32 %s25, 1
      %s27 = scalar_select %p24, %s25, %s26
      %p30 = pneg %p24
      %p31 = scmp.eq.s32.totalorder %s15, 1
      %p32 = por %p30, %p31
      %p33 = scmp.ne.s32.totalorder %s25, %s28
      %p34 = scmp.eq.s32.totalorder %s15, 0
      %p35 = por %p33, %p34
      %p36 = scmp.ne.s32.totalorder %s25, %s28
      %p37 = scmp.eq.s32.totalorder %s20, 1
      %p38 = por %p36, %p37
      %p39 = scmp.ne.s32.totalorder %s28, %s29
      %p40 = scmp.eq.s32.totalorder %s20, 0
      %p41 = por %p39, %p40
      %p42 = scmp.ne.s32.totalorder %s28, %s29
      %p43 = scmp.eq.s32.totalorder %s21, 1
      %p44 = por %p42, %p43
      %p46 = scmp.ne.s32.totalorder %s29, %s45
      %p47 = scmp.eq.s32.totalorder %s21, 0
      %p48 = por %p46, %p47
      %s49 = ssub.s32 %s15, %s22
      %p50 = scmp.eq.s32.totalorder %s49, 0
      %s52 = sadd.s32 %s51, 1
      %s53 = scalar_select %p50, %s51, %s52
      %p56 = pneg %p50
      %p57 = scmp.eq.s32.totalorder %s15, 1
      %p58 = por %p56, %p57
      %p59 = scmp.ne.s32.totalorder %s51, %s54
      %p60 = scmp.eq.s32.totalorder %s15, 0
      %p61 = por %p59, %p60
      %p62 = scmp.ne.s32.totalorder %s51, %s54
      %p63 = scmp.eq.s32.totalorder %s20, 1
      %p64 = por %p62, %p63
      %p65 = scmp.ne.s32.totalorder %s54, %s55
      %p66 = scmp.eq.s32.totalorder %s20, 0
      %p67 = por %p65, %p66
      %p68 = scmp.ne.s32.totalorder %s54, %s55
      %p69 = scmp.eq.s32.totalorder %s21, 1
      %p70 = por %p68, %p69
      %p72 = scmp.ne.s32.totalorder %s55, %s71
      %p73 = scmp.eq.s32.totalorder %s21, 0
      %p74 = por %p72, %p73
      %s76 = sadd.s32 %s75, 1
      %p79 = scmp.eq.s32.totalorder %s15, 1
      %p80 = scmp.ne.s32.totalorder %s75, %s77
      %p81 = scmp.eq.s32.totalorder %s15, 0
      %p82 = por %p80, %p81
      %p83 = scmp.ne.s32.totalorder %s75, %s77
      %p84 = scmp.eq.s32.totalorder %s20, 1
      %p85 = por %p83, %p84
      %p86 = scmp.ne.s32.totalorder %s77, %s78
      %p87 = scmp.eq.s32.totalorder %s20, 0
      %p88 = por %p86, %p87
      %p89 = scmp.ne.s32.totalorder %s77, %s78
      %p90 = scmp.eq.s32.totalorder %s21, 1
      %p91 = por %p89, %p90
      %p93 = scmp.ne.s32.totalorder %s78, %s92
      %p94 = scmp.eq.s32.totalorder %s21, 0
      %p95 = por %p93, %p94
      %s97 = sadd.s32 %s96, 1
      %p100 = scmp.eq.s32.totalorder %s15, 1
      %p101 = scmp.ne.s32.totalorder %s96, %s98
      %p102 = scmp.eq.s32.totalorder %s15, 0
      %p103 = por %p101, %p102
      %p104 = scmp.ne.s32.totalorder %s96, %s98
      %p105 = scmp.eq.s32.totalorder %s20, 1
      %p106 = por %p104, %p105
      %p107 = scmp.ne.s32.totalorder %s98, %s99
      %p108 = scmp.eq.s32.totalorder %s20, 0
      %p109 = por %p107, %p108
      %p110 = scmp.ne.s32.totalorder %s98, %s99
      %p111 = scmp.eq.s32.totalorder %s21, 1
      %p112 = por %p110, %p111
      %p114 = scmp.ne.s32.totalorder %s99, %s113
      %p115 = scmp.eq.s32.totalorder %s21, 0
      %p116 = por %p114, %p115
      %s118 = sadd.s32 %s117, 1
      %p121 = scmp.eq.s32.totalorder %s15, 1
      %p122 = scmp.ne.s32.totalorder %s117, %s119
      %p123 = scmp.eq.s32.totalorder %s15, 0
      %p124 = por %p122, %p123
      %p125 = scmp.ne.s32.totalorder %s117, %s119
      %p126 = scmp.eq.s32.totalorder %s20, 1
      %p127 = por %p125, %p126
      %p128 = scmp.ne.s32.totalorder %s119, %s120
      %p129 = scmp.eq.s32.totalorder %s20, 0
      %p130 = por %p128, %p129
      %p131 = scmp.ne.s32.totalorder %s119, %s120
      %p132 = scmp.eq.s32.totalorder %s21, 1
      %p133 = por %p131, %p132
      %p135 = scmp.ne.s32.totalorder %s120, %s134
      %p136 = scmp.eq.s32.totalorder %s21, 0
      %p137 = por %p135, %p136
      %s139 = sadd.s32 %s138, 1
      %p142 = scmp.eq.s32.totalorder %s15, 1
      %p143 = scmp.ne.s32.totalorder %s138, %s140
      %p144 = scmp.eq.s32.totalorder %s15, 0
      %p145 = por %p143, %p144
      %p146 = scmp.ne.s32.totalorder %s138, %s140
      %p147 = scmp.eq.s32.totalorder %s20, 1
      %p148 = por %p146, %p147
      %p149 = scmp.ne.s32.totalorder %s140, %s141
      %p150 = scmp.eq.s32.totalorder %s20, 0
      %p151 = por %p149, %p150
      %p152 = scmp.ne.s32.totalorder %s140, %s141
      %p153 = scmp.eq.s32.totalorder %s21, 1
      %p154 = por %p152, %p153
      %p156 = scmp.ne.s32.totalorder %s141, %s155
      %p157 = scmp.eq.s32.totalorder %s21, 0
      %p158 = por %p156, %p157
      %s159 = ssub.s32 %s15, %s22
      %p160 = scmp.eq.s32.totalorder %s159, 0
      %s162 = sadd.s32 %s161, 1
      %s163 = scalar_select %p160, %s161, %s162
      %p166 = pneg %p160
      %p167 = scmp.eq.s32.totalorder %s15, 1
      %p168 = por %p166, %p167
      %p169 = scmp.ne.s32.totalorder %s161, %s164
      %p170 = scmp.eq.s32.totalorder %s15, 0
      %p171 = por %p169, %p170
      %p172 = scmp.ne.s32.totalorder %s161, %s164
      %p173 = scmp.eq.s32.totalorder %s20, 1
      %p174 = por %p172, %p173
      %p175 = scmp.ne.s32.totalorder %s164, %s165
      %p176 = scmp.eq.s32.totalorder %s20, 0
      %p177 = por %p175, %p176
      %p178 = scmp.ne.s32.totalorder %s164, %s165
      %p179 = scmp.eq.s32.totalorder %s21, 1
      %p180 = por %p178, %p179
      %p182 = scmp.ne.s32.totalorder %s165, %s181
      %p183 = scmp.eq.s32.totalorder %s21, 0
      %p184 = por %p182, %p183
      %p185 = scmp.le.s32.totalorder 1, %s15
      %p186 = scmp.lt.s32.totalorder %s15, 3
      %p187 = pnand %p185, %p186
      %p188 = pneg %p187
      // Predicated region
      $region9: #{tpu_custom_call.1} parent=5 // pred_check
        _
      $region10: #{tpu_custom_call.1} parent=5 // pred_check_branch
        %190 = sbr.rel (%p187) target = $region12
      $region11: #{tpu_custom_call.1} parent=5 // pred_region
        %s191 = ssub.s32 %s15, 1
        // Predicated region
        $region13: #{tpu_custom_call.1} parent=11 // pred_check
          %p192 = pneg %p88
        $region14: #{tpu_custom_call.1} parent=11 // pred_check_branch
          %194 = sbr.rel (%p192) target = $region16
        $region15: #{tpu_custom_call.1} parent=11 // pred_region
          _
        $region16: #{tpu_custom_call.1} parent=11 // pred_fallthru
          _
        // Predicated region
        $region17: #{tpu_custom_call.1} parent=11 // pred_check
          %p195 = pneg %p109
        $region18: #{tpu_custom_call.1} parent=11 // pred_check_branch
          %197 = sbr.rel (%p195) target = $region20
        $region19: #{tpu_custom_call.1} parent=11 // pred_region
          _
        $region20: #{tpu_custom_call.1} parent=11 // pred_fallthru
          _
        // Predicated region
        $region21: #{tpu_custom_call.1} parent=11 // pred_check
          %p198 = pneg %p130
        $region22: #{tpu_custom_call.1} parent=11 // pred_check_branch
          %200 = sbr.rel (%p198) target = $region24
        $region23: #{tpu_custom_call.1} parent=11 // pred_region
          _
        $region24: #{tpu_custom_call.1} parent=11 // pred_fallthru
          _
        // Predicated region
        $region25: #{tpu_custom_call.1} parent=11 // pred_check
          %p201 = pneg %p151
        $region26: #{tpu_custom_call.1} parent=11 // pred_check_branch
          %203 = sbr.rel (%p201) target = $region28
        $region27: #{tpu_custom_call.1} parent=11 // pred_region
          _
        $region28: #{tpu_custom_call.1} parent=11 // pred_fallthru
          _
      $region12: #{tpu_custom_call.1} parent=5 // pred_fallthru
        _
      %p204 = scmp.lt.s32.totalorder %s15, 2
      // Predicated region
      $region29: #{tpu_custom_call.1} parent=5 // pred_check
        %p205 = pneg %p204
      $region30: #{tpu_custom_call.1} parent=5 // pred_check_branch
        %207 = sbr.rel (%p205) target = $region32
      $region31: #{tpu_custom_call.1} parent=5 // pred_region
        // Predicated region
        $region33: #{tpu_custom_call.1} parent=31 // pred_check
          %p208 = pneg %p35
        $region34: #{tpu_custom_call.1} parent=31 // pred_check_branch
          %210 = sbr.rel (%p208) target = $region36
        $region35: #{tpu_custom_call.1} parent=31 // pred_region
          %p211 = scmp.lt.s32.totalorder %s15, 1
          %s212 = scalar_select %p211, %s15, 1
          %s213 = smul.addr %s212, 8
          %s214 = scalar_lea.vmem %s0, %s213
        $region36: #{tpu_custom_call.1} parent=31 // pred_fallthru
          _
        // Predicated region
        $region37: #{tpu_custom_call.1} parent=31 // pred_check
          %p215 = pneg %p61
        $region38: #{tpu_custom_call.1} parent=31 // pred_check_branch
          %217 = sbr.rel (%p215) target = $region40
        $region39: #{tpu_custom_call.1} parent=31 // pred_region
          %p218 = scmp.lt.s32.totalorder %s15, 1
          %s219 = scalar_select %p218, %s15, 1
          %s220 = smul.addr %s219, 8
          %s221 = scalar_lea.vmem %s1, %s220
        $region40: #{tpu_custom_call.1} parent=31 // pred_fallthru
          _
      $region32: #{tpu_custom_call.1} parent=5 // pred_fallthru
        _
      %p222 = scmp.le.s32.totalorder 1, %s15
      %p223 = scmp.lt.s32.totalorder %s15, 3
      %p224 = pnand %p222, %p223
      %p225 = pneg %p224
      // Predicated region
      $region41: #{tpu_custom_call.1} parent=5 // pred_check
        _
      $region42: #{tpu_custom_call.1} parent=5 // pred_check_branch
        %227 = sbr.rel (%p224) target = $region44
      $region43: #{tpu_custom_call.1} parent=5 // pred_region
        %s228 = ssub.s32 %s15, 1
        %p229 = scmp.lt.s32.totalorder %s20, 1
        %s230 = scalar_select %p229, %s20, 1
        %s231 = smul.addr %s230, 8
        %s232 = scalar_lea.vmem %s0, %s231
        %p233 = pneg %p41
        %p234 = pneg %p38
        %p235 = scmp.lt.s32.totalorder %s20, 1
        %s236 = scalar_select %p235, %s20, 1
        %s237 = smul.addr %s236, 8
        %s238 = scalar_lea.vmem %s1, %s237
        %p239 = pneg %p67
        %p240 = pneg %p64
        %p241 = pneg %p88
        %p242 = pneg %p85
        %p243 = pneg %p109
        %p244 = pneg %p106
        %p245 = pneg %p130
        %p246 = pneg %p127
        %p247 = pneg %p151
        %p248 = pneg %p148
        %p249 = pneg %p177
        %p250 = pneg %p174
        %s251 = sand.u32 %s164, 1
        %s252 = scalar_lea.sflag [#allocation3], %s251
        %s253 = sand.u32 %s164, 1
        %s254 = smul.addr %s253, 8
        %s255 = scalar_lea.vmem [#allocation2], %s254
        %p256 = scmp.lt.s32.totalorder %s20, 1
        %s257 = scalar_select %p256, %s20, 1
        %s258 = smul.addr %s257, 8
        %s259 = scalar_lea.vmem %s0, %s258
        %p260 = scmp.lt.s32.totalorder %s20, 1
        %s261 = scalar_select %p260, %s20, 1
        %s262 = smul.addr %s261, 8
        %s263 = scalar_lea.vmem %s1, %s262
        %v264 = vld [vmem:[%s259] sm:$0xff]
        %v265 = vld [vmem:[%s263] sm:$0xff]
        %v266 = vld [vmem:[%s2] sm:$0xff]
        %v267 = vld [vmem:[%s2 + $0x8] sm:$0xff]
        %v268 = vld [vmem:[%s2 + $0x10] sm:$0xff]
        %v269 = vld [vmem:[%s2 + $0x18] sm:$0xff]
        %v270 = vld [vmem:[%s2 + $0x30] sm:$0xff]
        %v271 = vld [vmem:[%s2 + $0x38] sm:$0xff]
        %v272 = vld [vmem:[%s2 + $0x40] sm:$0xff]
        %v273 = vld [vmem:[%s2 + $0x48] sm:$0xff]
        %v274 = vld [vmem:[%s2 + $0x60] sm:$0xff]
        %v275 = vld [vmem:[%s2 + $0x68] sm:$0xff]
        %v276 = vld [vmem:[%s2 + $0x70] sm:$0xff]
        %v277 = vld [vmem:[%s2 + $0x78] sm:$0xff]
        %v278 = vld [vmem:[%s2 + $0x90] sm:$0xff]
        %v279 = vld [vmem:[%s2 + $0x98] sm:$0xff]
        %v280 = vld [vmem:[%s2 + $0xa0] sm:$0xff]
        %v281 = vld [vmem:[%s2 + $0xa8] sm:$0xff]
        %v282 = vld [vmem:[%s2 + $0x20] sm:$0xff]
        %v283 = vld [vmem:[%s2 + $0x50] sm:$0xff]
        %v284 = vld [vmem:[%s2 + $0x80] sm:$0xff]
        %v285 = vld [vmem:[%s2 + $0xb0] sm:$0xff]
        %v286 = vld [vmem:[%s2 + $0x28] sm:$0x1]
        %v287 = vld [vmem:[%s2 + $0x58] sm:$0x1]
        %v288 = vld [vmem:[%s2 + $0x88] sm:$0x1]
        %v289 = vld [vmem:[%s2 + $0xb8] sm:$0x1]
        %v290 = vlaneseq
        %v291 = vshrl.u32 %v290, 7
        %v292 = vsub.s32 0, %v291
        %v293 = vrot.slane %v286, %v292
        %v294 = vlaneseq
        %v295 = vshrl.u32 %v294, 7
        %v296 = vsub.s32 0, %v295
        %v297 = vrot.slane %v287, %v296
        %v298 = vlaneseq
        %v299 = vshrl.u32 %v298, 7
        %v300 = vsub.s32 0, %v299
        %v301 = vrot.slane %v288, %v300
        %v302 = vlaneseq
        %v303 = vshrl.u32 %v302, 7
        %v304 = vsub.s32 0, %v303
        %v305 = vrot.slane %v289, %v304
        %vm306 = vcmask 261120
        %v308 = vsel %vm306, %v264, 0
        %310 = vmatprep.subr.mxu0 0.0
        %311 = vmatpush1.msra.mxu0 %v266
        %312 = vmatprep.subr.mxu0 0.0
        %313 = vmatpush1.msra.mxu0 %v267
        %314 = vmatprep.subr.mxu0 0.0
        %315 = vmatpush1.msra.mxu0 %v268
        %316 = vmatprep.subr.mxu0 0.0
        %317 = vmatpush1.msra.mxu0 %v269
        %318 = vmatprep.subr.mxu0 0.0
        %319 = vmatpush1.msra.mxu0 0.0
        %320 = vmatprep.subr.mxu0 0.0
        %321 = vmatpush1.msra.mxu0 0.0
        %322 = vmatprep.subr.mxu0 0.0
        %323 = vmatpush1.msra.mxu0 0.0
        %324 = vmatprep.subr.mxu0 0.0
        %325 = vmatpush1.msra.mxu0 0.0
        %326 = vmatprep.subr.mxu0 0.0
        %327 = vmatpush1.msra.mxu0 0.0
        %328 = vmatprep.subr.mxu0 0.0
        %329 = vmatpush1.msra.mxu0 0.0
        %330 = vmatprep.subr.mxu0 0.0
        %331 = vmatpush1.msra.mxu0 0.0
        %332 = vmatprep.subr.mxu0 0.0
        %333 = vmatpush1.msra.mxu0 0.0
        %334 = vmatprep.subr.mxu0 0.0
        %335 = vmatpush1.msra.mxu0 0.0
        %336 = vmatprep.subr.mxu0 0.0
        %337 = vmatpush1.msra.mxu0 0.0
        %338 = vmatprep.subr.mxu0 0.0
        %339 = vmatpush1.msra.mxu0 0.0
        %340 = vmatprep.subr.mxu0 0.0
        %341 = vmatpush1.msra.mxu0 0.0
        %342 = vmatprep.subr.mxu0 0.0
        %343 = vmatpush1.msra.mxu0 0.0
        %344 = vmatprep.subr.mxu0 0.0
        %345 = vmatpush1.msra.mxu0 0.0
        %346 = vmatprep.subr.mxu0 0.0
        %347 = vmatpush1.msra.mxu0 0.0
        %348 = vmatprep.subr.mxu0 0.0
        %349 = vmatpush1.msra.mxu0 0.0
        %350 = vmatprep.subr.mxu0 0.0
        %351 = vmatpush1.msra.mxu0 0.0
        %352 = vmatprep.subr.mxu0 0.0
        %353 = vmatpush1.msra.mxu0 0.0
        %354 = vmatprep.subr.mxu0 0.0
        %355 = vmatpush1.msra.mxu0 0.0
        %356 = vmatprep.subr.mxu0 0.0
        %357 = vmatpush1.msra.mxu0 0.0
        %358 = vmatprep.subr.mxu0 0.0
        %359 = vmatpush1.msra.mxu0 0.0
        %360 = vmatprep.subr.mxu0 0.0
        %361 = vmatpush1.msra.mxu0 0.0
        %362 = vmatprep.subr.mxu0 0.0
        %363 = vmatpush1.msra.mxu0 0.0
        %364 = vmatprep.subr.mxu0 0.0
        %365 = vmatpush1.msra.mxu0 0.0
        %366 = vmatprep.subr.mxu0 0.0
        %367 = vmatpush1.msra.mxu0 0.0
        %368 = vmatprep.subr.mxu0 0.0
        %369 = vmatpush1.msra.mxu0 0.0
        %370 = vmatprep.subr.mxu0 0.0
        %371 = vmatpush1.msra.mxu0 0.0
        %372 = vmatprep.subr.mxu0 0.0
        %373 = vmatpush1.msra.mxu0 0.0
        %374 = vmatprep.mubr.f32.mxu0 0.0
        %375 = vmatmul.mubr.f32.gmra.mrb[0].mxu0 %v308
        %v376 = vpop.f32.mrb[0].mxu0
        %v377 = vadd.f32 %v293, %v376
        %v378 = vpop.f32.mrb[0].mxu0
        %379 = vdwg.mxu0
        %380 = vmatprep.subr.mxu0 0.0
        %381 = vmatpush1.msra.mxu0 %v270
        %382 = vmatprep.subr.mxu0 0.0
        %383 = vmatpush1.msra.mxu0 %v271
        %384 = vmatprep.subr.mxu0 0.0
        %385 = vmatpush1.msra.mxu0 %v272
        %386 = vmatprep.subr.mxu0 0.0
        %387 = vmatpush1.msra.mxu0 %v273
        %388 = vmatprep.subr.mxu0 0.0
        %389 = vmatpush1.msra.mxu0 0.0
        %390 = vmatprep.subr.mxu0 0.0
        %391 = vmatpush1.msra.mxu0 0.0
        %392 = vmatprep.subr.mxu0 0.0
        %393 = vmatpush1.msra.mxu0 0.0
        %394 = vmatprep.subr.mxu0 0.0
        %395 = vmatpush1.msra.mxu0 0.0
        %396 = vmatprep.subr.mxu0 0.0
        %397 = vmatpush1.msra.mxu0 0.0
        %398 = vmatprep.subr.mxu0 0.0
        %399 = vmatpush1.msra.mxu0 0.0
        %400 = vmatprep.subr.mxu0 0.0
        %401 = vmatpush1.msra.mxu0 0.0
        %402 = vmatprep.subr.mxu0 0.0
        %403 = vmatpush1.msra.mxu0 0.0
        %404 = vmatprep.subr.mxu0 0.0
        %405 = vmatpush1.msra.mxu0 0.0
        %406 = vmatprep.subr.mxu0 0.0
        %407 = vmatpush1.msra.mxu0 0.0
        %408 = vmatprep.subr.mxu0 0.0
        %409 = vmatpush1.msra.mxu0 0.0
        %410 = vmatprep.subr.mxu0 0.0
        %411 = vmatpush1.msra.mxu0 0.0
        %412 = vmatprep.subr.mxu0 0.0
        %413 = vmatpush1.msra.mxu0 0.0
        %414 = vmatprep.subr.mxu0 0.0
        %415 = vmatpush1.msra.mxu0 0.0
        %416 = vmatprep.subr.mxu0 0.0
        %417 = vmatpush1.msra.mxu0 0.0
        %418 = vmatprep.subr.mxu0 0.0
        %419 = vmatpush1.msra.mxu0 0.0
        %420 = vmatprep.subr.mxu0 0.0
        %421 = vmatpush1.msra.mxu0 0.0
        %422 = vmatprep.subr.mxu0 0.0
        %423 = vmatpush1.msra.mxu0 0.0
        %424 = vmatprep.subr.mxu0 0.0
        %425 = vmatpush1.msra.mxu0 0.0
        %426 = vmatprep.subr.mxu0 0.0
        %427 = vmatpush1.msra.mxu0 0.0
        %428 = vmatprep.subr.mxu0 0.0
        %429 = vmatpush1.msra.mxu0 0.0
        %430 = vmatprep.subr.mxu0 0.0
        %431 = vmatpush1.msra.mxu0 0.0
        %432 = vmatprep.subr.mxu0 0.0
        %433 = vmatpush1.msra.mxu0 0.0
        %434 = vmatprep.subr.mxu0 0.0
        %435 = vmatpush1.msra.mxu0 0.0
        %436 = vmatprep.subr.mxu0 0.0
        %437 = vmatpush1.msra.mxu0 0.0
        %438 = vmatprep.subr.mxu0 0.0
        %439 = vmatpush1.msra.mxu0 0.0
        %440 = vmatprep.subr.mxu0 0.0
        %441 = vmatpush1.msra.mxu0 0.0
        %442 = vmatprep.subr.mxu0 0.0
        %443 = vmatpush1.msra.mxu0 0.0
        %444 = vmatprep.mubr.f32.mxu0 0.0
        %445 = vmatmul.mubr.f32.gmra.mrb[0].mxu0 %v308
        %v446 = vpop.f32.mrb[0].mxu0
        %v447 = vadd.f32 %v297, %v446
        %v448 = vpop.f32.mrb[0].mxu0
        %449 = vdwg.mxu0
        %450 = vmatprep.subr.mxu0 0.0
        %451 = vmatpush1.msra.mxu0 %v274
        %452 = vmatprep.subr.mxu0 0.0
        %453 = vmatpush1.msra.mxu0 %v275
        %454 = vmatprep.subr.mxu0 0.0
        %455 = vmatpush1.msra.mxu0 %v276
        %456 = vmatprep.subr.mxu0 0.0
        %457 = vmatpush1.msra.mxu0 %v277
        %458 = vmatprep.subr.mxu0 0.0
        %459 = vmatpush1.msra.mxu0 0.0
        %460 = vmatprep.subr.mxu0 0.0
        %461 = vmatpush1.msra.mxu0 0.0
        %462 = vmatprep.subr.mxu0 0.0
        %463 = vmatpush1.msra.mxu0 0.0
        %464 = vmatprep.subr.mxu0 0.0
        %465 = vmatpush1.msra.mxu0 0.0
        %466 = vmatprep.subr.mxu0 0.0
        %467 = vmatpush1.msra.mxu0 0.0
        %468 = vmatprep.subr.mxu0 0.0
        %469 = vmatpush1.msra.mxu0 0.0
        %470 = vmatprep.subr.mxu0 0.0
        %471 = vmatpush1.msra.mxu0 0.0
        %472 = vmatprep.subr.mxu0 0.0
        %473 = vmatpush1.msra.mxu0 0.0
        %474 = vmatprep.subr.mxu0 0.0
        %475 = vmatpush1.msra.mxu0 0.0
        %476 = vmatprep.subr.mxu0 0.0
        %477 = vmatpush1.msra.mxu0 0.0
        %478 = vmatprep.subr.mxu0 0.0
        %479 = vmatpush1.msra.mxu0 0.0
        %480 = vmatprep.subr.mxu0 0.0
        %481 = vmatpush1.msra.mxu0 0.0
        %482 = vmatprep.subr.mxu0 0.0
        %483 = vmatpush1.msra.mxu0 0.0
        %484 = vmatprep.subr.mxu0 0.0
        %485 = vmatpush1.msra.mxu0 0.0
        %486 = vmatprep.subr.mxu0 0.0
        %487 = vmatpush1.msra.mxu0 0.0
        %488 = vmatprep.subr.mxu0 0.0
        %489 = vmatpush1.msra.mxu0 0.0
        %490 = vmatprep.subr.mxu0 0.0
        %491 = vmatpush1.msra.mxu0 0.0
        %492 = vmatprep.subr.mxu0 0.0
        %493 = vmatpush1.msra.mxu0 0.0
        %494 = vmatprep.subr.mxu0 0.0
        %495 = vmatpush1.msra.mxu0 0.0
        %496 = vmatprep.subr.mxu0 0.0
        %497 = vmatpush1.msra.mxu0 0.0
        %498 = vmatprep.subr.mxu0 0.0
        %499 = vmatpush1.msra.mxu0 0.0
        %500 = vmatprep.subr.mxu0 0.0
        %501 = vmatpush1.msra.mxu0 0.0
        %502 = vmatprep.subr.mxu0 0.0
        %503 = vmatpush1.msra.mxu0 0.0
        %504 = vmatprep.subr.mxu0 0.0
        %505 = vmatpush1.msra.mxu0 0.0
        %506 = vmatprep.subr.mxu0 0.0
        %507 = vmatpush1.msra.mxu0 0.0
        %508 = vmatprep.subr.mxu0 0.0
        %509 = vmatpush1.msra.mxu0 0.0
        %510 = vmatprep.subr.mxu0 0.0
        %511 = vmatpush1.msra.mxu0 0.0
        %512 = vmatprep.subr.mxu0 0.0
        %513 = vmatpush1.msra.mxu0 0.0
        %514 = vmatprep.mubr.f32.mxu0 0.0
        %515 = vmatmul.mubr.f32.gmra.mrb[0].mxu0 %v308
        %v516 = vpop.f32.mrb[0].mxu0
        %v517 = vadd.f32 %v301, %v516
        %v518 = vpop.f32.mrb[0].mxu0
        %519 = vdwg.mxu0
        %520 = vmatprep.subr.mxu0 0.0
        %521 = vmatpush1.msra.mxu0 %v278
        %522 = vmatprep.subr.mxu0 0.0
        %523 = vmatpush1.msra.mxu0 %v279
        %524 = vmatprep.subr.mxu0 0.0
        %525 = vmatpush1.msra.mxu0 %v280
        %526 = vmatprep.subr.mxu0 0.0
        %527 = vmatpush1.msra.mxu0 %v281
        %528 = vmatprep.subr.mxu0 0.0
        %529 = vmatpush1.msra.mxu0 0.0
        %530 = vmatprep.subr.mxu0 0.0
        %531 = vmatpush1.msra.mxu0 0.0
        %532 = vmatprep.subr.mxu0 0.0
        %533 = vmatpush1.msra.mxu0 0.0
        %534 = vmatprep.subr.mxu0 0.0
        %535 = vmatpush1.msra.mxu0 0.0
        %536 = vmatprep.subr.mxu0 0.0
        %537 = vmatpush1.msra.mxu0 0.0
        %538 = vmatprep.subr.mxu0 0.0
        %539 = vmatpush1.msra.mxu0 0.0
        %540 = vmatprep.subr.mxu0 0.0
        %541 = vmatpush1.msra.mxu0 0.0
        %542 = vmatprep.subr.mxu0 0.0
        %543 = vmatpush1.msra.mxu0 0.0
        %544 = vmatprep.subr.mxu0 0.0
        %545 = vmatpush1.msra.mxu0 0.0
        %546 = vmatprep.subr.mxu0 0.0
        %547 = vmatpush1.msra.mxu0 0.0
        %548 = vmatprep.subr.mxu0 0.0
        %549 = vmatpush1.msra.mxu0 0.0
        %550 = vmatprep.subr.mxu0 0.0
        %551 = vmatpush1.msra.mxu0 0.0
        %552 = vmatprep.subr.mxu0 0.0
        %553 = vmatpush1.msra.mxu0 0.0
        %554 = vmatprep.subr.mxu0 0.0
        %555 = vmatpush1.msra.mxu0 0.0
        %556 = vmatprep.subr.mxu0 0.0
        %557 = vmatpush1.msra.mxu0 0.0
        %558 = vmatprep.subr.mxu0 0.0
        %559 = vmatpush1.msra.mxu0 0.0
        %560 = vmatprep.subr.mxu0 0.0
        %561 = vmatpush1.msra.mxu0 0.0
        %562 = vmatprep.subr.mxu0 0.0
        %563 = vmatpush1.msra.mxu0 0.0
        %564 = vmatprep.subr.mxu0 0.0
        %565 = vmatpush1.msra.mxu0 0.0
        %566 = vmatprep.subr.mxu0 0.0
        %567 = vmatpush1.msra.mxu0 0.0
        %568 = vmatprep.subr.mxu0 0.0
        %569 = vmatpush1.msra.mxu0 0.0
        %570 = vmatprep.subr.mxu0 0.0
        %571 = vmatpush1.msra.mxu0 0.0
        %572 = vmatprep.subr.mxu0 0.0
        %573 = vmatpush1.msra.mxu0 0.0
        %574 = vmatprep.subr.mxu0 0.0
        %575 = vmatpush1.msra.mxu0 0.0
        %576 = vmatprep.subr.mxu0 0.0
        %577 = vmatpush1.msra.mxu0 0.0
        %578 = vmatprep.subr.mxu0 0.0
        %579 = vmatpush1.msra.mxu0 0.0
        %580 = vmatprep.subr.mxu0 0.0
        %581 = vmatpush1.msra.mxu0 0.0
        %582 = vmatprep.subr.mxu0 0.0
        %583 = vmatpush1.msra.mxu0 0.0
        %584 = vmatprep.mubr.f32.mxu0 0.0
        %585 = vmatmul.mubr.f32.gmra.mrb[0].mxu0 %v308
        %v586 = vpop.f32.mrb[0].mxu0
        %v587 = vadd.f32 %v305, %v586
        %v588 = vpop.f32.mrb[0].mxu0
        %589 = vdwg.mxu0
        %591 = vrot.lane.b32.xlu0 %v377, 120
        %v592 = vpop.permute.xlu0 %591
        %vm593 = vcmask 64512
        %v594 = vsel %vm593, %v377, 0
        %v596 = vsel %vm593, %v592, 0
        %598 = vmatprep.subr.mxu0 0.0
        %599 = vmatpush1.xpose.msra.mxu0 %v596
        %600 = vmatprep.subr.mxu0 0.0
        %601 = vmatpush1.xpose.msra.mxu0 0.0
        %602 = vmatprep.subr.mxu0 0.0
        %603 = vmatpush1.xpose.msra.mxu0 0.0
        %604 = vmatprep.subr.mxu0 0.0
        %605 = vmatpush1.xpose.msra.mxu0 0.0
        %606 = vmatprep.subr.mxu0 0.0
        %607 = vmatpush1.xpose.msra.mxu0 0.0
        %608 = vmatprep.subr.mxu0 0.0
        %609 = vmatpush1.xpose.msra.mxu0 0.0
        %610 = vmatprep.subr.mxu0 0.0
        %611 = vmatpush1.xpose.msra.mxu0 0.0
        %612 = vmatprep.subr.mxu0 0.0
        %613 = vmatpush1.xpose.msra.mxu0 0.0
        %614 = vmatprep.subr.mxu0 0.0
        %615 = vmatpush1.xpose.msra.mxu0 0.0
        %616 = vmatprep.subr.mxu0 0.0
        %617 = vmatpush1.xpose.msra.mxu0 0.0
        %618 = vmatprep.subr.mxu0 0.0
        %619 = vmatpush1.xpose.msra.mxu0 0.0
        %620 = vmatprep.subr.mxu0 0.0
        %621 = vmatpush1.xpose.msra.mxu0 0.0
        %622 = vmatprep.subr.mxu0 0.0
        %623 = vmatpush1.xpose.msra.mxu0 0.0
        %624 = vmatprep.subr.mxu0 0.0
        %625 = vmatpush1.xpose.msra.mxu0 0.0
        %626 = vmatprep.subr.mxu0 0.0
        %627 = vmatpush1.xpose.msra.mxu0 0.0
        %628 = vmatprep.subr.mxu0 0.0
        %629 = vmatpush1.xpose.msra.mxu0 0.0
        %630 = vmatprep.subr.mxu0 0.0
        %631 = vmatpush1.xpose.msra.mxu0 0.0
        %632 = vmatprep.subr.mxu0 0.0
        %633 = vmatpush1.xpose.msra.mxu0 0.0
        %634 = vmatprep.subr.mxu0 0.0
        %635 = vmatpush1.xpose.msra.mxu0 0.0
        %636 = vmatprep.subr.mxu0 0.0
        %637 = vmatpush1.xpose.msra.mxu0 0.0
        %638 = vmatprep.subr.mxu0 0.0
        %639 = vmatpush1.xpose.msra.mxu0 0.0
        %640 = vmatprep.subr.mxu0 0.0
        %641 = vmatpush1.xpose.msra.mxu0 0.0
        %642 = vmatprep.subr.mxu0 0.0
        %643 = vmatpush1.xpose.msra.mxu0 0.0
        %644 = vmatprep.subr.mxu0 0.0
        %645 = vmatpush1.xpose.msra.mxu0 0.0
        %646 = vmatprep.subr.mxu0 0.0
        %647 = vmatpush1.xpose.msra.mxu0 0.0
        %648 = vmatprep.subr.mxu0 0.0
        %649 = vmatpush1.xpose.msra.mxu0 0.0
        %650 = vmatprep.subr.mxu0 0.0
        %651 = vmatpush1.xpose.msra.mxu0 0.0
        %652 = vmatprep.subr.mxu0 0.0
        %653 = vmatpush1.xpose.msra.mxu0 0.0
        %654 = vmatprep.subr.mxu0 0.0
        %655 = vmatpush1.xpose.msra.mxu0 0.0
        %656 = vmatprep.subr.mxu0 0.0
        %657 = vmatpush1.xpose.msra.mxu0 0.0
        %658 = vmatprep.subr.mxu0 0.0
        %659 = vmatpush1.xpose.msra.mxu0 0.0
        %660 = vmatprep.subr.mxu0 0.0
        %661 = vmatpush1.xpose.msra.mxu0 0.0
        %662 = vmatprep.mubr.f32.mxu0 0.0
        %663 = vmatmul.mubr.f32.gmra.mrb[0].mxu0 %v594
        %v664 = vpop.f32.mrb[0].mxu0
        %v665 = vadd.f32 %v265, %v664
        %v666 = vpop.f32.mrb[0].mxu0
        %667 = vdwg.mxu0
        %669 = vrot.lane.b32.xlu0 %v447, 120
        %v670 = vpop.permute.xlu0 %669
        %v671 = vsel %vm593, %v447, 0
        %v673 = vsel %vm593, %v670, 0
        %675 = vmatprep.subr.mxu0 0.0
        %676 = vmatpush1.xpose.msra.mxu0 %v673
        %677 = vmatprep.subr.mxu0 0.0
        %678 = vmatpush1.xpose.msra.mxu0 0.0
        %679 = vmatprep.subr.mxu0 0.0
        %680 = vmatpush1.xpose.msra.mxu0 0.0
        %681 = vmatprep.subr.mxu0 0.0
        %682 = vmatpush1.xpose.msra.mxu0 0.0
        %683 = vmatprep.subr.mxu0 0.0
        %684 = vmatpush1.xpose.msra.mxu0 0.0
        %685 = vmatprep.subr.mxu0 0.0
        %686 = vmatpush1.xpose.msra.mxu0 0.0
        %687 = vmatprep.subr.mxu0 0.0
        %688 = vmatpush1.xpose.msra.mxu0 0.0
        %689 = vmatprep.subr.mxu0 0.0
        %690 = vmatpush1.xpose.msra.mxu0 0.0
        %691 = vmatprep.subr.mxu0 0.0
        %692 = vmatpush1.xpose.msra.mxu0 0.0
        %693 = vmatprep.subr.mxu0 0.0
        %694 = vmatpush1.xpose.msra.mxu0 0.0
        %695 = vmatprep.subr.mxu0 0.0
        %696 = vmatpush1.xpose.msra.mxu0 0.0
        %697 = vmatprep.subr.mxu0 0.0
        %698 = vmatpush1.xpose.msra.mxu0 0.0
        %699 = vmatprep.subr.mxu0 0.0
        %700 = vmatpush1.xpose.msra.mxu0 0.0
        %701 = vmatprep.subr.mxu0 0.0
        %702 = vmatpush1.xpose.msra.mxu0 0.0
        %703 = vmatprep.subr.mxu0 0.0
        %704 = vmatpush1.xpose.msra.mxu0 0.0
        %705 = vmatprep.subr.mxu0 0.0
        %706 = vmatpush1.xpose.msra.mxu0 0.0
        %707 = vmatprep.subr.mxu0 0.0
        %708 = vmatpush1.xpose.msra.mxu0 0.0
        %709 = vmatprep.subr.mxu0 0.0
        %710 = vmatpush1.xpose.msra.mxu0 0.0
        %711 = vmatprep.subr.mxu0 0.0
        %712 = vmatpush1.xpose.msra.mxu0 0.0
        %713 = vmatprep.subr.mxu0 0.0
        %714 = vmatpush1.xpose.msra.mxu0 0.0
        %715 = vmatprep.subr.mxu0 0.0
        %716 = vmatpush1.xpose.msra.mxu0 0.0
        %717 = vmatprep.subr.mxu0 0.0
        %718 = vmatpush1.xpose.msra.mxu0 0.0
        %719 = vmatprep.subr.mxu0 0.0
        %720 = vmatpush1.xpose.msra.mxu0 0.0
        %721 = vmatprep.subr.mxu0 0.0
        %722 = vmatpush1.xpose.msra.mxu0 0.0
        %723 = vmatprep.subr.mxu0 0.0
        %724 = vmatpush1.xpose.msra.mxu0 0.0
        %725 = vmatprep.subr.mxu0 0.0
        %726 = vmatpush1.xpose.msra.mxu0 0.0
        %727 = vmatprep.subr.mxu0 0.0
        %728 = vmatpush1.xpose.msra.mxu0 0.0
        %729 = vmatprep.subr.mxu0 0.0
        %730 = vmatpush1.xpose.msra.mxu0 0.0
        %731 = vmatprep.subr.mxu0 0.0
        %732 = vmatpush1.xpose.msra.mxu0 0.0
        %733 = vmatprep.subr.mxu0 0.0
        %734 = vmatpush1.xpose.msra.mxu0 0.0
        %735 = vmatprep.subr.mxu0 0.0
        %736 = vmatpush1.xpose.msra.mxu0 0.0
        %737 = vmatprep.subr.mxu0 0.0
        %738 = vmatpush1.xpose.msra.mxu0 0.0
        %739 = vmatprep.mubr.f32.mxu0 0.0
        %740 = vmatmul.mubr.f32.gmra.mrb[0].mxu0 %v671
        %v741 = vpop.f32.mrb[0].mxu0
        %v742 = vadd.f32 %v265, %v741
        %v743 = vpop.f32.mrb[0].mxu0
        %744 = vdwg.mxu0
        %746 = vrot.lane.b32.xlu0 %v517, 120
        %v747 = vpop.permute.xlu0 %746
        %v748 = vsel %vm593, %v517, 0
        %v750 = vsel %vm593, %v747, 0
        %752 = vmatprep.subr.mxu0 0.0
        %753 = vmatpush1.xpose.msra.mxu0 %v750
        %754 = vmatprep.subr.mxu0 0.0
        %755 = vmatpush1.xpose.msra.mxu0 0.0
        %756 = vmatprep.subr.mxu0 0.0
        %757 = vmatpush1.xpose.msra.mxu0 0.0
        %758 = vmatprep.subr.mxu0 0.0
        %759 = vmatpush1.xpose.msra.mxu0 0.0
        %760 = vmatprep.subr.mxu0 0.0
        %761 = vmatpush1.xpose.msra.mxu0 0.0
        %762 = vmatprep.subr.mxu0 0.0
        %763 = vmatpush1.xpose.msra.mxu0 0.0
        %764 = vmatprep.subr.mxu0 0.0
        %765 = vmatpush1.xpose.msra.mxu0 0.0
        %766 = vmatprep.subr.mxu0 0.0
        %767 = vmatpush1.xpose.msra.mxu0 0.0
        %768 = vmatprep.subr.mxu0 0.0
        %769 = vmatpush1.xpose.msra.mxu0 0.0
        %770 = vmatprep.subr.mxu0 0.0
        %771 = vmatpush1.xpose.msra.mxu0 0.0
        %772 = vmatprep.subr.mxu0 0.0
        %773 = vmatpush1.xpose.msra.mxu0 0.0
        %774 = vmatprep.subr.mxu0 0.0
        %775 = vmatpush1.xpose.msra.mxu0 0.0
        %776 = vmatprep.subr.mxu0 0.0
        %777 = vmatpush1.xpose.msra.mxu0 0.0
        %778 = vmatprep.subr.mxu0 0.0
        %779 = vmatpush1.xpose.msra.mxu0 0.0
        %780 = vmatprep.subr.mxu0 0.0
        %781 = vmatpush1.xpose.msra.mxu0 0.0
        %782 = vmatprep.subr.mxu0 0.0
        %783 = vmatpush1.xpose.msra.mxu0 0.0
        %784 = vmatprep.subr.mxu0 0.0
        %785 = vmatpush1.xpose.msra.mxu0 0.0
        %786 = vmatprep.subr.mxu0 0.0
        %787 = vmatpush1.xpose.msra.mxu0 0.0
        %788 = vmatprep.subr.mxu0 0.0
        %789 = vmatpush1.xpose.msra.mxu0 0.0
        %790 = vmatprep.subr.mxu0 0.0
        %791 = vmatpush1.xpose.msra.mxu0 0.0
        %792 = vmatprep.subr.mxu0 0.0
        %793 = vmatpush1.xpose.msra.mxu0 0.0
        %794 = vmatprep.subr.mxu0 0.0
        %795 = vmatpush1.xpose.msra.mxu0 0.0
        %796 = vmatprep.subr.mxu0 0.0
        %797 = vmatpush1.xpose.msra.mxu0 0.0
        %798 = vmatprep.subr.mxu0 0.0
        %799 = vmatpush1.xpose.msra.mxu0 0.0
        %800 = vmatprep.subr.mxu0 0.0
        %801 = vmatpush1.xpose.msra.mxu0 0.0
        %802 = vmatprep.subr.mxu0 0.0
        %803 = vmatpush1.xpose.msra.mxu0 0.0
        %804 = vmatprep.subr.mxu0 0.0
        %805 = vmatpush1.xpose.msra.mxu0 0.0
        %806 = vmatprep.subr.mxu0 0.0
        %807 = vmatpush1.xpose.msra.mxu0 0.0
        %808 = vmatprep.subr.mxu0 0.0
        %809 = vmatpush1.xpose.msra.mxu0 0.0
        %810 = vmatprep.subr.mxu0 0.0
        %811 = vmatpush1.xpose.msra.mxu0 0.0
        %812 = vmatprep.subr.mxu0 0.0
        %813 = vmatpush1.xpose.msra.mxu0 0.0
        %814 = vmatprep.subr.mxu0 0.0
        %815 = vmatpush1.xpose.msra.mxu0 0.0
        %816 = vmatprep.mubr.f32.mxu0 0.0
        %817 = vmatmul.mubr.f32.gmra.mrb[0].mxu0 %v748
        %v818 = vpop.f32.mrb[0].mxu0
        %v819 = vadd.f32 %v265, %v818
        %v820 = vpop.f32.mrb[0].mxu0
        %821 = vdwg.mxu0
        %823 = vrot.lane.b32.xlu0 %v587, 120
        %v824 = vpop.permute.xlu0 %823
        %v825 = vsel %vm593, %v587, 0
        %v827 = vsel %vm593, %v824, 0
        %829 = vmatprep.subr.mxu0 0.0
        %830 = vmatpush1.xpose.msra.mxu0 %v827
        %831 = vmatprep.subr.mxu0 0.0
        %832 = vmatpush1.xpose.msra.mxu0 0.0
        %833 = vmatprep.subr.mxu0 0.0
        %834 = vmatpush1.xpose.msra.mxu0 0.0
        %835 = vmatprep.subr.mxu0 0.0
        %836 = vmatpush1.xpose.msra.mxu0 0.0
        %837 = vmatprep.subr.mxu0 0.0
        %838 = vmatpush1.xpose.msra.mxu0 0.0
        %839 = vmatprep.subr.mxu0 0.0
        %840 = vmatpush1.xpose.msra.mxu0 0.0
        %841 = vmatprep.subr.mxu0 0.0
        %842 = vmatpush1.xpose.msra.mxu0 0.0
        %843 = vmatprep.subr.mxu0 0.0
        %844 = vmatpush1.xpose.msra.mxu0 0.0
        %845 = vmatprep.subr.mxu0 0.0
        %846 = vmatpush1.xpose.msra.mxu0 0.0
        %847 = vmatprep.subr.mxu0 0.0
        %848 = vmatpush1.xpose.msra.mxu0 0.0
        %849 = vmatprep.subr.mxu0 0.0
        %850 = vmatpush1.xpose.msra.mxu0 0.0
        %851 = vmatprep.subr.mxu0 0.0
        %852 = vmatpush1.xpose.msra.mxu0 0.0
        %853 = vmatprep.subr.mxu0 0.0
        %854 = vmatpush1.xpose.msra.mxu0 0.0
        %855 = vmatprep.subr.mxu0 0.0
        %856 = vmatpush1.xpose.msra.mxu0 0.0
        %857 = vmatprep.subr.mxu0 0.0
        %858 = vmatpush1.xpose.msra.mxu0 0.0
        %859 = vmatprep.subr.mxu0 0.0
        %860 = vmatpush1.xpose.msra.mxu0 0.0
        %861 = vmatprep.subr.mxu0 0.0
        %862 = vmatpush1.xpose.msra.mxu0 0.0
        %863 = vmatprep.subr.mxu0 0.0
        %864 = vmatpush1.xpose.msra.mxu0 0.0
        %865 = vmatprep.subr.mxu0 0.0
        %866 = vmatpush1.xpose.msra.mxu0 0.0
        %867 = vmatprep.subr.mxu0 0.0
        %868 = vmatpush1.xpose.msra.mxu0 0.0
        %869 = vmatprep.subr.mxu0 0.0
        %870 = vmatpush1.xpose.msra.mxu0 0.0
        %871 = vmatprep.subr.mxu0 0.0
        %872 = vmatpush1.xpose.msra.mxu0 0.0
        %873 = vmatprep.subr.mxu0 0.0
        %874 = vmatpush1.xpose.msra.mxu0 0.0
        %875 = vmatprep.subr.mxu0 0.0
        %876 = vmatpush1.xpose.msra.mxu0 0.0
        %877 = vmatprep.subr.mxu0 0.0
        %878 = vmatpush1.xpose.msra.mxu0 0.0
        %879 = vmatprep.subr.mxu0 0.0
        %880 = vmatpush1.xpose.msra.mxu0 0.0
        %881 = vmatprep.subr.mxu0 0.0
        %882 = vmatpush1.xpose.msra.mxu0 0.0
        %883 = vmatprep.subr.mxu0 0.0
        %884 = vmatpush1.xpose.msra.mxu0 0.0
        %885 = vmatprep.subr.mxu0 0.0
        %886 = vmatpush1.xpose.msra.mxu0 0.0
        %887 = vmatprep.subr.mxu0 0.0
        %888 = vmatpush1.xpose.msra.mxu0 0.0
        %889 = vmatprep.subr.mxu0 0.0
        %890 = vmatpush1.xpose.msra.mxu0 0.0
        %891 = vmatprep.subr.mxu0 0.0
        %892 = vmatpush1.xpose.msra.mxu0 0.0
        %893 = vmatprep.mubr.f32.mxu0 0.0
        %894 = vmatmul.mubr.f32.gmra.mrb[0].mxu0 %v825
        %v895 = vpop.f32.mrb[0].mxu0
        %v896 = vadd.f32 %v265, %v895
        %v897 = vpop.f32.mrb[0].mxu0
        %898 = vdwg.mxu0
        %v899 = vsel %vm593, %v665, -inf
        %900 = vmax.xlane.f32.xlu0 %v899
        %v901 = vpop.xlane.xlu0 %900
        %v902 = vsel %vm593, %v742, -inf
        %903 = vmax.xlane.f32.xlu0 %v902
        %v904 = vpop.xlane.xlu0 %903
        %v905 = vsel %vm593, %v819, -inf
        %906 = vmax.xlane.f32.xlu0 %v905
        %v907 = vpop.xlane.xlu0 %906
        %v908 = vsel %vm593, %v896, -inf
        %909 = vmax.xlane.f32.xlu0 %v908
        %v910 = vpop.xlane.xlu0 %909
        %v911 = vsub.f32 %v665, %v901
        %v912 = vsub.f32 %v742, %v904
        %v913 = vsub.f32 %v819, %v907
        %v914 = vsub.f32 %v896, %v910
        %v915 = vmul.f32 %v911, 1.442695
        %v916 = vpow.pop %v915
        %v917 = vmul.f32 %v912, 1.442695
        %v918 = vpow.pop %v917
        %v919 = vmul.f32 %v913, 1.442695
        %v920 = vpow.pop %v919
        %v921 = vmul.f32 %v914, 1.442695
        %v922 = vpow.pop %v921
        %v923 = vsel %vm593, %v916, 0.0
        %924 = vadd.xlane.f32.xlu0 %v923
        %v925 = vpop.xlane.xlu0 %924
        %v926 = vsel %vm593, %v918, 0.0
        %927 = vadd.xlane.f32.xlu0 %v926
        %v928 = vpop.xlane.xlu0 %927
        %v929 = vsel %vm593, %v920, 0.0
        %930 = vadd.xlane.f32.xlu0 %v929
        %v931 = vpop.xlane.xlu0 %930
        %v932 = vsel %vm593, %v922, 0.0
        %933 = vadd.xlane.f32.xlu0 %v932
        %v934 = vpop.xlane.xlu0 %933
        %v935 = vrcp.pop %v925
        %v936 = vmul.f32 %v916, %v935
        %v937 = vrcp.pop %v928
        %v938 = vmul.f32 %v918, %v937
        %v939 = vrcp.pop %v931
        %v940 = vmul.f32 %v920, %v939
        %v941 = vrcp.pop %v934
        %v942 = vmul.f32 %v922, %v941
        %943 = vrot.lane.b32.xlu0 %v377, 112
        %v944 = vpop.permute.xlu0 %943
        %v947 = vsel %vm593, %v936, 0
        %949 = vmatprep.subr.mxu0 0.0
        %950 = vmatpush1.msra.mxu0 %v944
        %951 = vmatprep.subr.mxu0 0.0
        %952 = vmatpush1.msra.mxu0 0.0
        %953 = vmatprep.subr.mxu0 0.0
        %954 = vmatpush1.msra.mxu0 0.0
        %955 = vmatprep.subr.mxu0 0.0
        %956 = vmatpush1.msra.mxu0 0.0
        %957 = vmatprep.subr.mxu0 0.0
        %958 = vmatpush1.msra.mxu0 0.0
        %959 = vmatprep.subr.mxu0 0.0
        %960 = vmatpush1.msra.mxu0 0.0
        %961 = vmatprep.subr.mxu0 0.0
        %962 = vmatpush1.msra.mxu0 0.0
        %963 = vmatprep.subr.mxu0 0.0
        %964 = vmatpush1.msra.mxu0 0.0
        %965 = vmatprep.subr.mxu0 0.0
        %966 = vmatpush1.msra.mxu0 0.0
        %967 = vmatprep.subr.mxu0 0.0
        %968 = vmatpush1.msra.mxu0 0.0
        %969 = vmatprep.subr.mxu0 0.0
        %970 = vmatpush1.msra.mxu0 0.0
        %971 = vmatprep.subr.mxu0 0.0
        %972 = vmatpush1.msra.mxu0 0.0
        %973 = vmatprep.subr.mxu0 0.0
        %974 = vmatpush1.msra.mxu0 0.0
        %975 = vmatprep.subr.mxu0 0.0
        %976 = vmatpush1.msra.mxu0 0.0
        %977 = vmatprep.subr.mxu0 0.0
        %978 = vmatpush1.msra.mxu0 0.0
        %979 = vmatprep.subr.mxu0 0.0
        %980 = vmatpush1.msra.mxu0 0.0
        %981 = vmatprep.subr.mxu0 0.0
        %982 = vmatpush1.msra.mxu0 0.0
        %983 = vmatprep.subr.mxu0 0.0
        %984 = vmatpush1.msra.mxu0 0.0
        %985 = vmatprep.subr.mxu0 0.0
        %986 = vmatpush1.msra.mxu0 0.0
        %987 = vmatprep.subr.mxu0 0.0
        %988 = vmatpush1.msra.mxu0 0.0
        %989 = vmatprep.subr.mxu0 0.0
        %990 = vmatpush1.msra.mxu0 0.0
        %991 = vmatprep.subr.mxu0 0.0
        %992 = vmatpush1.msra.mxu0 0.0
        %993 = vmatprep.subr.mxu0 0.0
        %994 = vmatpush1.msra.mxu0 0.0
        %995 = vmatprep.subr.mxu0 0.0
        %996 = vmatpush1.msra.mxu0 0.0
        %997 = vmatprep.subr.mxu0 0.0
        %998 = vmatpush1.msra.mxu0 0.0
        %999 = vmatprep.subr.mxu0 0.0
        %1000 = vmatpush1.msra.mxu0 0.0
        %1001 = vmatprep.subr.mxu0 0.0
        %1002 = vmatpush1.msra.mxu0 0.0
        %1003 = vmatprep.subr.mxu0 0.0
        %1004 = vmatpush1.msra.mxu0 0.0
        %1005 = vmatprep.subr.mxu0 0.0
        %1006 = vmatpush1.msra.mxu0 0.0
        %1007 = vmatprep.subr.mxu0 0.0
        %1008 = vmatpush1.msra.mxu0 0.0
        %1009 = vmatprep.subr.mxu0 0.0
        %1010 = vmatpush1.msra.mxu0 0.0
        %1011 = vmatprep.subr.mxu0 0.0
        %1012 = vmatpush1.msra.mxu0 0.0
        %1013 = vmatprep.mubr.f32.mxu0 0.0
        %1014 = vmatmul.mubr.f32.gmra.mrb[0].mxu0 %v947
        %v1015 = vpop.f32.mrb[0].mxu0
        %v1016 = vadd.f32 0.0, %v1015
        %v1017 = vpop.f32.mrb[0].mxu0
        %1018 = vdwg.mxu0
        %1019 = vrot.lane.b32.xlu0 %v447, 112
        %v1020 = vpop.permute.xlu0 %1019
        %v1023 = vsel %vm593, %v938, 0
        %1025 = vmatprep.subr.mxu0 0.0
        %1026 = vmatpush1.msra.mxu0 %v1020
        %1027 = vmatprep.subr.mxu0 0.0
        %1028 = vmatpush1.msra.mxu0 0.0
        %1029 = vmatprep.subr.mxu0 0.0
        %1030 = vmatpush1.msra.mxu0 0.0
        %1031 = vmatprep.subr.mxu0 0.0
        %1032 = vmatpush1.msra.mxu0 0.0
        %1033 = vmatprep.subr.mxu0 0.0
        %1034 = vmatpush1.msra.mxu0 0.0
        %1035 = vmatprep.subr.mxu0 0.0
        %1036 = vmatpush1.msra.mxu0 0.0
        %1037 = vmatprep.subr.mxu0 0.0
        %1038 = vmatpush1.msra.mxu0 0.0
        %1039 = vmatprep.subr.mxu0 0.0
        %1040 = vmatpush1.msra.mxu0 0.0
        %1041 = vmatprep.subr.mxu0 0.0
        %1042 = vmatpush1.msra.mxu0 0.0
        %1043 = vmatprep.subr.mxu0 0.0
        %1044 = vmatpush1.msra.mxu0 0.0
        %1045 = vmatprep.subr.mxu0 0.0
        %1046 = vmatpush1.msra.mxu0 0.0
        %1047 = vmatprep.subr.mxu0 0.0
        %1048 = vmatpush1.msra.mxu0 0.0
        %1049 = vmatprep.subr.mxu0 0.0
        %1050 = vmatpush1.msra.mxu0 0.0
        %1051 = vmatprep.subr.mxu0 0.0
        %1052 = vmatpush1.msra.mxu0 0.0
        %1053 = vmatprep.subr.mxu0 0.0
        %1054 = vmatpush1.msra.mxu0 0.0
        %1055 = vmatprep.subr.mxu0 0.0
        %1056 = vmatpush1.msra.mxu0 0.0
        %1057 = vmatprep.subr.mxu0 0.0
        %1058 = vmatpush1.msra.mxu0 0.0
        %1059 = vmatprep.subr.mxu0 0.0
        %1060 = vmatpush1.msra.mxu0 0.0
        %1061 = vmatprep.subr.mxu0 0.0
        %1062 = vmatpush1.msra.mxu0 0.0
        %1063 = vmatprep.subr.mxu0 0.0
        %1064 = vmatpush1.msra.mxu0 0.0
        %1065 = vmatprep.subr.mxu0 0.0
        %1066 = vmatpush1.msra.mxu0 0.0
        %1067 = vmatprep.subr.mxu0 0.0
        %1068 = vmatpush1.msra.mxu0 0.0
        %1069 = vmatprep.subr.mxu0 0.0
        %1070 = vmatpush1.msra.mxu0 0.0
        %1071 = vmatprep.subr.mxu0 0.0
        %1072 = vmatpush1.msra.mxu0 0.0
        %1073 = vmatprep.subr.mxu0 0.0
        %1074 = vmatpush1.msra.mxu0 0.0
        %1075 = vmatprep.subr.mxu0 0.0
        %1076 = vmatpush1.msra.mxu0 0.0
        %1077 = vmatprep.subr.mxu0 0.0
        %1078 = vmatpush1.msra.mxu0 0.0
        %1079 = vmatprep.subr.mxu0 0.0
        %1080 = vmatpush1.msra.mxu0 0.0
        %1081 = vmatprep.subr.mxu0 0.0
        %1082 = vmatpush1.msra.mxu0 0.0
        %1083 = vmatprep.subr.mxu0 0.0
        %1084 = vmatpush1.msra.mxu0 0.0
        %1085 = vmatprep.subr.mxu0 0.0
        %1086 = vmatpush1.msra.mxu0 0.0
        %1087 = vmatprep.subr.mxu0 0.0
        %1088 = vmatpush1.msra.mxu0 0.0
        %1089 = vmatprep.mubr.f32.mxu0 0.0
        %1090 = vmatmul.mubr.f32.gmra.mrb[0].mxu0 %v1023
        %v1091 = vpop.f32.mrb[0].mxu0
        %v1092 = vadd.f32 0.0, %v1091
        %v1093 = vpop.f32.mrb[0].mxu0
        %1094 = vdwg.mxu0
        %1095 = vrot.lane.b32.xlu0 %v517, 112
        %v1096 = vpop.permute.xlu0 %1095
        %v1099 = vsel %vm593, %v940, 0
        %1101 = vmatprep.subr.mxu0 0.0
        %1102 = vmatpush1.msra.mxu0 %v1096
        %1103 = vmatprep.subr.mxu0 0.0
        %1104 = vmatpush1.msra.mxu0 0.0
        %1105 = vmatprep.subr.mxu0 0.0
        %1106 = vmatpush1.msra.mxu0 0.0
        %1107 = vmatprep.subr.mxu0 0.0
        %1108 = vmatpush1.msra.mxu0 0.0
        %1109 = vmatprep.subr.mxu0 0.0
        %1110 = vmatpush1.msra.mxu0 0.0
        %1111 = vmatprep.subr.mxu0 0.0
        %1112 = vmatpush1.msra.mxu0 0.0
        %1113 = vmatprep.subr.mxu0 0.0
        %1114 = vmatpush1.msra.mxu0 0.0
        %1115 = vmatprep.subr.mxu0 0.0
        %1116 = vmatpush1.msra.mxu0 0.0
        %1117 = vmatprep.subr.mxu0 0.0
        %1118 = vmatpush1.msra.mxu0 0.0
        %1119 = vmatprep.subr.mxu0 0.0
        %1120 = vmatpush1.msra.mxu0 0.0
        %1121 = vmatprep.subr.mxu0 0.0
        %1122 = vmatpush1.msra.mxu0 0.0
        %1123 = vmatprep.subr.mxu0 0.0
        %1124 = vmatpush1.msra.mxu0 0.0
        %1125 = vmatprep.subr.mxu0 0.0
        %1126 = vmatpush1.msra.mxu0 0.0
        %1127 = vmatprep.subr.mxu0 0.0
        %1128 = vmatpush1.msra.mxu0 0.0
        %1129 = vmatprep.subr.mxu0 0.0
        %1130 = vmatpush1.msra.mxu0 0.0
        %1131 = vmatprep.subr.mxu0 0.0
        %1132 = vmatpush1.msra.mxu0 0.0
        %1133 = vmatprep.subr.mxu0 0.0
        %1134 = vmatpush1.msra.mxu0 0.0
        %1135 = vmatprep.subr.mxu0 0.0
        %1136 = vmatpush1.msra.mxu0 0.0
        %1137 = vmatprep.subr.mxu0 0.0
        %1138 = vmatpush1.msra.mxu0 0.0
        %1139 = vmatprep.subr.mxu0 0.0
        %1140 = vmatpush1.msra.mxu0 0.0
        %1141 = vmatprep.subr.mxu0 0.0
        %1142 = vmatpush1.msra.mxu0 0.0
        %1143 = vmatprep.subr.mxu0 0.0
        %1144 = vmatpush1.msra.mxu0 0.0
        %1145 = vmatprep.subr.mxu0 0.0
        %1146 = vmatpush1.msra.mxu0 0.0
        %1147 = vmatprep.subr.mxu0 0.0
        %1148 = vmatpush1.msra.mxu0 0.0
        %1149 = vmatprep.subr.mxu0 0.0
        %1150 = vmatpush1.msra.mxu0 0.0
        %1151 = vmatprep.subr.mxu0 0.0
        %1152 = vmatpush1.msra.mxu0 0.0
        %1153 = vmatprep.subr.mxu0 0.0
        %1154 = vmatpush1.msra.mxu0 0.0
        %1155 = vmatprep.subr.mxu0 0.0
        %1156 = vmatpush1.msra.mxu0 0.0
        %1157 = vmatprep.subr.mxu0 0.0
        %1158 = vmatpush1.msra.mxu0 0.0
        %1159 = vmatprep.subr.mxu0 0.0
        %1160 = vmatpush1.msra.mxu0 0.0
        %1161 = vmatprep.subr.mxu0 0.0
        %1162 = vmatpush1.msra.mxu0 0.0
        %1163 = vmatprep.subr.mxu0 0.0
        %1164 = vmatpush1.msra.mxu0 0.0
        %1165 = vmatprep.mubr.f32.mxu0 0.0
        %1166 = vmatmul.mubr.f32.gmra.mrb[0].mxu0 %v1099
        %v1167 = vpop.f32.mrb[0].mxu0
        %v1168 = vadd.f32 0.0, %v1167
        %v1169 = vpop.f32.mrb[0].mxu0
        %1170 = vdwg.mxu0
        %1171 = vrot.lane.b32.xlu0 %v587, 112
        %v1172 = vpop.permute.xlu0 %1171
        %v1175 = vsel %vm593, %v942, 0
        %1177 = vmatprep.subr.mxu0 0.0
        %1178 = vmatpush1.msra.mxu0 %v1172
        %1179 = vmatprep.subr.mxu0 0.0
        %1180 = vmatpush1.msra.mxu0 0.0
        %1181 = vmatprep.subr.mxu0 0.0
        %1182 = vmatpush1.msra.mxu0 0.0
        %1183 = vmatprep.subr.mxu0 0.0
        %1184 = vmatpush1.msra.mxu0 0.0
        %1185 = vmatprep.subr.mxu0 0.0
        %1186 = vmatpush1.msra.mxu0 0.0
        %1187 = vmatprep.subr.mxu0 0.0
        %1188 = vmatpush1.msra.mxu0 0.0
        %1189 = vmatprep.subr.mxu0 0.0
        %1190 = vmatpush1.msra.mxu0 0.0
        %1191 = vmatprep.subr.mxu0 0.0
        %1192 = vmatpush1.msra.mxu0 0.0
        %1193 = vmatprep.subr.mxu0 0.0
        %1194 = vmatpush1.msra.mxu0 0.0
        %1195 = vmatprep.subr.mxu0 0.0
        %1196 = vmatpush1.msra.mxu0 0.0
        %1197 = vmatprep.subr.mxu0 0.0
        %1198 = vmatpush1.msra.mxu0 0.0
        %1199 = vmatprep.subr.mxu0 0.0
        %1200 = vmatpush1.msra.mxu0 0.0
        %1201 = vmatprep.subr.mxu0 0.0
        %1202 = vmatpush1.msra.mxu0 0.0
        %1203 = vmatprep.subr.mxu0 0.0
        %1204 = vmatpush1.msra.mxu0 0.0
        %1205 = vmatprep.subr.mxu0 0.0
        %1206 = vmatpush1.msra.mxu0 0.0
        %1207 = vmatprep.subr.mxu0 0.0
        %1208 = vmatpush1.msra.mxu0 0.0
        %1209 = vmatprep.subr.mxu0 0.0
        %1210 = vmatpush1.msra.mxu0 0.0
        %1211 = vmatprep.subr.mxu0 0.0
        %1212 = vmatpush1.msra.mxu0 0.0
        %1213 = vmatprep.subr.mxu0 0.0
        %1214 = vmatpush1.msra.mxu0 0.0
        %1215 = vmatprep.subr.mxu0 0.0
        %1216 = vmatpush1.msra.mxu0 0.0
        %1217 = vmatprep.subr.mxu0 0.0
        %1218 = vmatpush1.msra.mxu0 0.0
        %1219 = vmatprep.subr.mxu0 0.0
        %1220 = vmatpush1.msra.mxu0 0.0
        %1221 = vmatprep.subr.mxu0 0.0
        %1222 = vmatpush1.msra.mxu0 0.0
        %1223 = vmatprep.subr.mxu0 0.0
        %1224 = vmatpush1.msra.mxu0 0.0
        %1225 = vmatprep.subr.mxu0 0.0
        %1226 = vmatpush1.msra.mxu0 0.0
        %1227 = vmatprep.subr.mxu0 0.0
        %1228 = vmatpush1.msra.mxu0 0.0
        %1229 = vmatprep.subr.mxu0 0.0
        %1230 = vmatpush1.msra.mxu0 0.0
        %1231 = vmatprep.subr.mxu0 0.0
        %1232 = vmatpush1.msra.mxu0 0.0
        %1233 = vmatprep.subr.mxu0 0.0
        %1234 = vmatpush1.msra.mxu0 0.0
        %1235 = vmatprep.subr.mxu0 0.0
        %1236 = vmatpush1.msra.mxu0 0.0
        %1237 = vmatprep.subr.mxu0 0.0
        %1238 = vmatpush1.msra.mxu0 0.0
        %1239 = vmatprep.subr.mxu0 0.0
        %1240 = vmatpush1.msra.mxu0 0.0
        %1241 = vmatprep.mubr.f32.mxu0 0.0
        %1242 = vmatmul.mubr.f32.gmra.mrb[0].mxu0 %v1175
        %v1243 = vpop.f32.mrb[0].mxu0
        %v1244 = vadd.f32 0.0, %v1243
        %v1245 = vpop.f32.mrb[0].mxu0
        %1246 = vdwg.mxu0
        %v1248 = vsel %vm593, %v1016, 0
        %1250 = vmatprep.subr.mxu0 0.0
        %1251 = vmatpush1.msra.mxu0 %v282
        %1252 = vmatprep.subr.mxu0 0.0
        %1253 = vmatpush1.msra.mxu0 0.0
        %1254 = vmatprep.subr.mxu0 0.0
        %1255 = vmatpush1.msra.mxu0 0.0
        %1256 = vmatprep.subr.mxu0 0.0
        %1257 = vmatpush1.msra.mxu0 0.0
        %1258 = vmatprep.subr.mxu0 0.0
        %1259 = vmatpush1.msra.mxu0 0.0
        %1260 = vmatprep.subr.mxu0 0.0
        %1261 = vmatpush1.msra.mxu0 0.0
        %1262 = vmatprep.subr.mxu0 0.0
        %1263 = vmatpush1.msra.mxu0 0.0
        %1264 = vmatprep.subr.mxu0 0.0
        %1265 = vmatpush1.msra.mxu0 0.0
        %1266 = vmatprep.subr.mxu0 0.0
        %1267 = vmatpush1.msra.mxu0 0.0
        %1268 = vmatprep.subr.mxu0 0.0
        %1269 = vmatpush1.msra.mxu0 0.0
        %1270 = vmatprep.subr.mxu0 0.0
        %1271 = vmatpush1.msra.mxu0 0.0
        %1272 = vmatprep.subr.mxu0 0.0
        %1273 = vmatpush1.msra.mxu0 0.0
        %1274 = vmatprep.subr.mxu0 0.0
        %1275 = vmatpush1.msra.mxu0 0.0
        %1276 = vmatprep.subr.mxu0 0.0
        %1277 = vmatpush1.msra.mxu0 0.0
        %1278 = vmatprep.subr.mxu0 0.0
        %1279 = vmatpush1.msra.mxu0 0.0
        %1280 = vmatprep.subr.mxu0 0.0
        %1281 = vmatpush1.msra.mxu0 0.0
        %1282 = vmatprep.subr.mxu0 0.0
        %1283 = vmatpush1.msra.mxu0 0.0
        %1284 = vmatprep.subr.mxu0 0.0
        %1285 = vmatpush1.msra.mxu0 0.0
        %1286 = vmatprep.subr.mxu0 0.0
        %1287 = vmatpush1.msra.mxu0 0.0
        %1288 = vmatprep.subr.mxu0 0.0
        %1289 = vmatpush1.msra.mxu0 0.0
        %1290 = vmatprep.subr.mxu0 0.0
        %1291 = vmatpush1.msra.mxu0 0.0
        %1292 = vmatprep.subr.mxu0 0.0
        %1293 = vmatpush1.msra.mxu0 0.0
        %1294 = vmatprep.subr.mxu0 0.0
        %1295 = vmatpush1.msra.mxu0 0.0
        %1296 = vmatprep.subr.mxu0 0.0
        %1297 = vmatpush1.msra.mxu0 0.0
        %1298 = vmatprep.subr.mxu0 0.0
        %1299 = vmatpush1.msra.mxu0 0.0
        %1300 = vmatprep.subr.mxu0 0.0
        %1301 = vmatpush1.msra.mxu0 0.0
        %1302 = vmatprep.subr.mxu0 0.0
        %1303 = vmatpush1.msra.mxu0 0.0
        %1304 = vmatprep.subr.mxu0 0.0
        %1305 = vmatpush1.msra.mxu0 0.0
        %1306 = vmatprep.subr.mxu0 0.0
        %1307 = vmatpush1.msra.mxu0 0.0
        %1308 = vmatprep.subr.mxu0 0.0
        %1309 = vmatpush1.msra.mxu0 0.0
        %1310 = vmatprep.subr.mxu0 0.0
        %1311 = vmatpush1.msra.mxu0 0.0
        %1312 = vmatprep.subr.mxu0 0.0
        %1313 = vmatpush1.msra.mxu0 0.0
        %1314 = vmatprep.mubr.f32.mxu0 0.0
        %1315 = vmatmul.mubr.f32.gmra.mrb[0].mxu0 %v1248
        %v1316 = vpop.f32.mrb[0].mxu0
        %v1317 = vadd.f32 0.0, %v1316
        %v1318 = vpop.f32.mrb[0].mxu0
        %1319 = vdwg.mxu0
        %v1321 = vsel %vm593, %v1092, 0
        %1323 = vmatprep.subr.mxu0 0.0
        %1324 = vmatpush1.msra.mxu0 %v283
        %1325 = vmatprep.subr.mxu0 0.0
        %1326 = vmatpush1.msra.mxu0 0.0
        %1327 = vmatprep.subr.mxu0 0.0
        %1328 = vmatpush1.msra.mxu0 0.0
        %1329 = vmatprep.subr.mxu0 0.0
        %1330 = vmatpush1.msra.mxu0 0.0
        %1331 = vmatprep.subr.mxu0 0.0
        %1332 = vmatpush1.msra.mxu0 0.0
        %1333 = vmatprep.subr.mxu0 0.0
        %1334 = vmatpush1.msra.mxu0 0.0
        %1335 = vmatprep.subr.mxu0 0.0
        %1336 = vmatpush1.msra.mxu0 0.0
        %1337 = vmatprep.subr.mxu0 0.0
        %1338 = vmatpush1.msra.mxu0 0.0
        %1339 = vmatprep.subr.mxu0 0.0
        %1340 = vmatpush1.msra.mxu0 0.0
        %1341 = vmatprep.subr.mxu0 0.0
        %1342 = vmatpush1.msra.mxu0 0.0
        %1343 = vmatprep.subr.mxu0 0.0
        %1344 = vmatpush1.msra.mxu0 0.0
        %1345 = vmatprep.subr.mxu0 0.0
        %1346 = vmatpush1.msra.mxu0 0.0
        %1347 = vmatprep.subr.mxu0 0.0
        %1348 = vmatpush1.msra.mxu0 0.0
        %1349 = vmatprep.subr.mxu0 0.0
        %1350 = vmatpush1.msra.mxu0 0.0
        %1351 = vmatprep.subr.mxu0 0.0
        %1352 = vmatpush1.msra.mxu0 0.0
        %1353 = vmatprep.subr.mxu0 0.0
        %1354 = vmatpush1.msra.mxu0 0.0
        %1355 = vmatprep.subr.mxu0 0.0
        %1356 = vmatpush1.msra.mxu0 0.0
        %1357 = vmatprep.subr.mxu0 0.0
        %1358 = vmatpush1.msra.mxu0 0.0
        %1359 = vmatprep.subr.mxu0 0.0
        %1360 = vmatpush1.msra.mxu0 0.0
        %1361 = vmatprep.subr.mxu0 0.0
        %1362 = vmatpush1.msra.mxu0 0.0
        %1363 = vmatprep.subr.mxu0 0.0
        %1364 = vmatpush1.msra.mxu0 0.0
        %1365 = vmatprep.subr.mxu0 0.0
        %1366 = vmatpush1.msra.mxu0 0.0
        %1367 = vmatprep.subr.mxu0 0.0
        %1368 = vmatpush1.msra.mxu0 0.0
        %1369 = vmatprep.subr.mxu0 0.0
        %1370 = vmatpush1.msra.mxu0 0.0
        %1371 = vmatprep.subr.mxu0 0.0
        %1372 = vmatpush1.msra.mxu0 0.0
        %1373 = vmatprep.subr.mxu0 0.0
        %1374 = vmatpush1.msra.mxu0 0.0
        %1375 = vmatprep.subr.mxu0 0.0
        %1376 = vmatpush1.msra.mxu0 0.0
        %1377 = vmatprep.subr.mxu0 0.0
        %1378 = vmatpush1.msra.mxu0 0.0
        %1379 = vmatprep.subr.mxu0 0.0
        %1380 = vmatpush1.msra.mxu0 0.0
        %1381 = vmatprep.subr.mxu0 0.0
        %1382 = vmatpush1.msra.mxu0 0.0
        %1383 = vmatprep.subr.mxu0 0.0
        %1384 = vmatpush1.msra.mxu0 0.0
        %1385 = vmatprep.subr.mxu0 0.0
        %1386 = vmatpush1.msra.mxu0 0.0
        %1387 = vmatprep.mubr.f32.mxu0 0.0
        %1388 = vmatmul.mubr.f32.gmra.mrb[0].mxu0 %v1321
        %v1389 = vpop.f32.mrb[0].mxu0
        %v1390 = vadd.f32 0.0, %v1389
        %v1391 = vpop.f32.mrb[0].mxu0
        %1392 = vdwg.mxu0
        %v1394 = vsel %vm593, %v1168, 0
        %1396 = vmatprep.subr.mxu0 0.0
        %1397 = vmatpush1.msra.mxu0 %v284
        %1398 = vmatprep.subr.mxu0 0.0
        %1399 = vmatpush1.msra.mxu0 0.0
        %1400 = vmatprep.subr.mxu0 0.0
        %1401 = vmatpush1.msra.mxu0 0.0
        %1402 = vmatprep.subr.mxu0 0.0
        %1403 = vmatpush1.msra.mxu0 0.0
        %1404 = vmatprep.subr.mxu0 0.0
        %1405 = vmatpush1.msra.mxu0 0.0
        %1406 = vmatprep.subr.mxu0 0.0
        %1407 = vmatpush1.msra.mxu0 0.0
        %1408 = vmatprep.subr.mxu0 0.0
        %1409 = vmatpush1.msra.mxu0 0.0
        %1410 = vmatprep.subr.mxu0 0.0
        %1411 = vmatpush1.msra.mxu0 0.0
        %1412 = vmatprep.subr.mxu0 0.0
        %1413 = vmatpush1.msra.mxu0 0.0
        %1414 = vmatprep.subr.mxu0 0.0
        %1415 = vmatpush1.msra.mxu0 0.0
        %1416 = vmatprep.subr.mxu0 0.0
        %1417 = vmatpush1.msra.mxu0 0.0
        %1418 = vmatprep.subr.mxu0 0.0
        %1419 = vmatpush1.msra.mxu0 0.0
        %1420 = vmatprep.subr.mxu0 0.0
        %1421 = vmatpush1.msra.mxu0 0.0
        %1422 = vmatprep.subr.mxu0 0.0
        %1423 = vmatpush1.msra.mxu0 0.0
        %1424 = vmatprep.subr.mxu0 0.0
        %1425 = vmatpush1.msra.mxu0 0.0
        %1426 = vmatprep.subr.mxu0 0.0
        %1427 = vmatpush1.msra.mxu0 0.0
        %1428 = vmatprep.subr.mxu0 0.0
        %1429 = vmatpush1.msra.mxu0 0.0
        %1430 = vmatprep.subr.mxu0 0.0
        %1431 = vmatpush1.msra.mxu0 0.0
        %1432 = vmatprep.subr.mxu0 0.0
        %1433 = vmatpush1.msra.mxu0 0.0
        %1434 = vmatprep.subr.mxu0 0.0
        %1435 = vmatpush1.msra.mxu0 0.0
        %1436 = vmatprep.subr.mxu0 0.0
        %1437 = vmatpush1.msra.mxu0 0.0
        %1438 = vmatprep.subr.mxu0 0.0
        %1439 = vmatpush1.msra.mxu0 0.0
        %1440 = vmatprep.subr.mxu0 0.0
        %1441 = vmatpush1.msra.mxu0 0.0
        %1442 = vmatprep.subr.mxu0 0.0
        %1443 = vmatpush1.msra.mxu0 0.0
        %1444 = vmatprep.subr.mxu0 0.0
        %1445 = vmatpush1.msra.mxu0 0.0
        %1446 = vmatprep.subr.mxu0 0.0
        %1447 = vmatpush1.msra.mxu0 0.0
        %1448 = vmatprep.subr.mxu0 0.0
        %1449 = vmatpush1.msra.mxu0 0.0
        %1450 = vmatprep.subr.mxu0 0.0
        %1451 = vmatpush1.msra.mxu0 0.0
        %1452 = vmatprep.subr.mxu0 0.0
        %1453 = vmatpush1.msra.mxu0 0.0
        %1454 = vmatprep.subr.mxu0 0.0
        %1455 = vmatpush1.msra.mxu0 0.0
        %1456 = vmatprep.subr.mxu0 0.0
        %1457 = vmatpush1.msra.mxu0 0.0
        %1458 = vmatprep.subr.mxu0 0.0
        %1459 = vmatpush1.msra.mxu0 0.0
        %1460 = vmatprep.mubr.f32.mxu0 0.0
        %1461 = vmatmul.mubr.f32.gmra.mrb[0].mxu0 %v1394
        %v1462 = vpop.f32.mrb[0].mxu0
        %v1463 = vadd.f32 0.0, %v1462
        %v1464 = vpop.f32.mrb[0].mxu0
        %1465 = vdwg.mxu0
        %v1467 = vsel %vm593, %v1244, 0
        %1469 = vmatprep.subr.mxu0 0.0
        %1470 = vmatpush1.msra.mxu0 %v285
        %1471 = vmatprep.subr.mxu0 0.0
        %1472 = vmatpush1.msra.mxu0 0.0
        %1473 = vmatprep.subr.mxu0 0.0
        %1474 = vmatpush1.msra.mxu0 0.0
        %1475 = vmatprep.subr.mxu0 0.0
        %1476 = vmatpush1.msra.mxu0 0.0
        %1477 = vmatprep.subr.mxu0 0.0
        %1478 = vmatpush1.msra.mxu0 0.0
        %1479 = vmatprep.subr.mxu0 0.0
        %1480 = vmatpush1.msra.mxu0 0.0
        %1481 = vmatprep.subr.mxu0 0.0
        %1482 = vmatpush1.msra.mxu0 0.0
        %1483 = vmatprep.subr.mxu0 0.0
        %1484 = vmatpush1.msra.mxu0 0.0
        %1485 = vmatprep.subr.mxu0 0.0
        %1486 = vmatpush1.msra.mxu0 0.0
        %1487 = vmatprep.subr.mxu0 0.0
        %1488 = vmatpush1.msra.mxu0 0.0
        %1489 = vmatprep.subr.mxu0 0.0
        %1490 = vmatpush1.msra.mxu0 0.0
        %1491 = vmatprep.subr.mxu0 0.0
        %1492 = vmatpush1.msra.mxu0 0.0
        %1493 = vmatprep.subr.mxu0 0.0
        %1494 = vmatpush1.msra.mxu0 0.0
        %1495 = vmatprep.subr.mxu0 0.0
        %1496 = vmatpush1.msra.mxu0 0.0
        %1497 = vmatprep.subr.mxu0 0.0
        %1498 = vmatpush1.msra.mxu0 0.0
        %1499 = vmatprep.subr.mxu0 0.0
        %1500 = vmatpush1.msra.mxu0 0.0
        %1501 = vmatprep.subr.mxu0 0.0
        %1502 = vmatpush1.msra.mxu0 0.0
        %1503 = vmatprep.subr.mxu0 0.0
        %1504 = vmatpush1.msra.mxu0 0.0
        %1505 = vmatprep.subr.mxu0 0.0
        %1506 = vmatpush1.msra.mxu0 0.0
        %1507 = vmatprep.subr.mxu0 0.0
        %1508 = vmatpush1.msra.mxu0 0.0
        %1509 = vmatprep.subr.mxu0 0.0
        %1510 = vmatpush1.msra.mxu0 0.0
        %1511 = vmatprep.subr.mxu0 0.0
        %1512 = vmatpush1.msra.mxu0 0.0
        %1513 = vmatprep.subr.mxu0 0.0
        %1514 = vmatpush1.msra.mxu0 0.0
        %1515 = vmatprep.subr.mxu0 0.0
        %1516 = vmatpush1.msra.mxu0 0.0
        %1517 = vmatprep.subr.mxu0 0.0
        %1518 = vmatpush1.msra.mxu0 0.0
        %1519 = vmatprep.subr.mxu0 0.0
        %1520 = vmatpush1.msra.mxu0 0.0
        %1521 = vmatprep.subr.mxu0 0.0
        %1522 = vmatpush1.msra.mxu0 0.0
        %1523 = vmatprep.subr.mxu0 0.0
        %1524 = vmatpush1.msra.mxu0 0.0
        %1525 = vmatprep.subr.mxu0 0.0
        %1526 = vmatpush1.msra.mxu0 0.0
        %1527 = vmatprep.subr.mxu0 0.0
        %1528 = vmatpush1.msra.mxu0 0.0
        %1529 = vmatprep.subr.mxu0 0.0
        %1530 = vmatpush1.msra.mxu0 0.0
        %1531 = vmatprep.subr.mxu0 0.0
        %1532 = vmatpush1.msra.mxu0 0.0
        %1533 = vmatprep.mubr.f32.mxu0 0.0
        %1534 = vmatmul.mubr.f32.gmra.mrb[0].mxu0 %v1467
        %v1535 = vpop.f32.mrb[0].mxu0
        %v1536 = vadd.f32 0.0, %v1535
        %v1537 = vpop.f32.mrb[0].mxu0
        %1538 = vdwg.mxu0
        %v1539 = vsel %vm306, %v1317, 0.0
        %v1540 = vsel %vm306, %v1390, 0.0
        %v1541 = vadd.f32 %v1539, %v1540
        %v1542 = vsel %vm306, %v1463, 0.0
        %v1543 = vadd.f32 %v1541, %v1542
        %v1544 = vsel %vm306, %v1536, 0.0
        %v1545 = vadd.f32 %v1543, %v1544
        %v1546 = vld [vmem:[%s5] sm:$0x1]
        %v1547 = vlaneseq
        %v1548 = vshrl.u32 %v1547, 7
        %v1549 = vsub.s32 0, %v1548
        %v1550 = vrot.slane %v1546, %v1549
        %v1551 = vadd.f32 %v1545, %v1550
        %v1552 = vadd.f32 %v264, %v1551
        %v1553 = vsel %vm306, %v1552, 0.0
        %1554 = vadd.xlane.f32.xlu0 %v1553
        %v1555 = vpop.xlane.xlu0 %1554
        %v1556 = vrcp.pop 32.0
        %v1557 = vmul.f32 %v1555, %v1556
        %v1558 = vsub.f32 %v1552, %v1557
        %v1559 = vmul.f32 %v1558, %v1558
        %v1560 = vsel %vm306, %v1559, 0.0
        %1561 = vadd.xlane.f32.xlu0 %v1560
        %v1562 = vpop.xlane.xlu0 %1561
        %v1563 = vmul.f32 %v1562, %v1556
        %v1564 = vadd.f32 %v1563, 1e-05
        %v1565 = vrsqrt.pop %v1564
        %v1566 = vmul.f32 %v1558, %v1565
        %v1567 = vld [vmem:[%s5 + $0x3] sm:$0x1]
        %v1568 = vlaneseq
        %v1569 = vshrl.u32 %v1568, 7
        %v1570 = vsub.s32 0, %v1569
        %v1571 = vrot.slane %v1567, %v1570
        %v1572 = vmul.f32 %v1566, %v1571
        %v1573 = vld [vmem:[%s5 + $0x4] sm:$0x1]
        %v1574 = vlaneseq
        %v1575 = vshrl.u32 %v1574, 7
        %v1576 = vsub.s32 0, %v1575
        %v1577 = vrot.slane %v1573, %v1576
        %v1578 = vadd.f32 %v1572, %v1577
        %v1579 = vld [vmem:[%s3] sm:$0xff]
        %v1580 = vld [vmem:[%s3 + $0x8] sm:$0xff]
        %v1581 = vld [vmem:[%s3 + $0x10] sm:$0xff]
        %v1582 = vld [vmem:[%s3 + $0x18] sm:$0xff]
        %v1583 = vld [vmem:[%s5 + $0x1] sm:$0x1]
        %v1584 = vlaneseq
        %v1585 = vshrl.u32 %v1584, 7
        %v1586 = vsub.s32 0, %v1585
        %v1587 = vrot.slane %v1583, %v1586
        %v1589 = vsel %vm306, %v1578, 0
        %1591 = vmatprep.subr.mxu0 0.0
        %1592 = vmatpush1.msra.mxu0 %v1579
        %1593 = vmatprep.subr.mxu0 0.0
        %1594 = vmatpush1.msra.mxu0 %v1580
        %1595 = vmatprep.subr.mxu0 0.0
        %1596 = vmatpush1.msra.mxu0 %v1581
        %1597 = vmatprep.subr.mxu0 0.0
        %1598 = vmatpush1.msra.mxu0 %v1582
        %1599 = vmatprep.subr.mxu0 0.0
        %1600 = vmatpush1.msra.mxu0 0.0
        %1601 = vmatprep.subr.mxu0 0.0
        %1602 = vmatpush1.msra.mxu0 0.0
        %1603 = vmatprep.subr.mxu0 0.0
        %1604 = vmatpush1.msra.mxu0 0.0
        %1605 = vmatprep.subr.mxu0 0.0
        %1606 = vmatpush1.msra.mxu0 0.0
        %1607 = vmatprep.subr.mxu0 0.0
        %1608 = vmatpush1.msra.mxu0 0.0
        %1609 = vmatprep.subr.mxu0 0.0
        %1610 = vmatpush1.msra.mxu0 0.0
        %1611 = vmatprep.subr.mxu0 0.0
        %1612 = vmatpush1.msra.mxu0 0.0
        %1613 = vmatprep.subr.mxu0 0.0
        %1614 = vmatpush1.msra.mxu0 0.0
        %1615 = vmatprep.subr.mxu0 0.0
        %1616 = vmatpush1.msra.mxu0 0.0
        %1617 = vmatprep.subr.mxu0 0.0
        %1618 = vmatpush1.msra.mxu0 0.0
        %1619 = vmatprep.subr.mxu0 0.0
        %1620 = vmatpush1.msra.mxu0 0.0
        %1621 = vmatprep.subr.mxu0 0.0
        %1622 = vmatpush1.msra.mxu0 0.0
        %1623 = vmatprep.subr.mxu0 0.0
        %1624 = vmatpush1.msra.mxu0 0.0
        %1625 = vmatprep.subr.mxu0 0.0
        %1626 = vmatpush1.msra.mxu0 0.0
        %1627 = vmatprep.subr.mxu0 0.0
        %1628 = vmatpush1.msra.mxu0 0.0
        %1629 = vmatprep.subr.mxu0 0.0
        %1630 = vmatpush1.msra.mxu0 0.0
        %1631 = vmatprep.subr.mxu0 0.0
        %1632 = vmatpush1.msra.mxu0 0.0
        %1633 = vmatprep.subr.mxu0 0.0
        %1634 = vmatpush1.msra.mxu0 0.0
        %1635 = vmatprep.subr.mxu0 0.0
        %1636 = vmatpush1.msra.mxu0 0.0
        %1637 = vmatprep.subr.mxu0 0.0
        %1638 = vmatpush1.msra.mxu0 0.0
        %1639 = vmatprep.subr.mxu0 0.0
        %1640 = vmatpush1.msra.mxu0 0.0
        %1641 = vmatprep.subr.mxu0 0.0
        %1642 = vmatpush1.msra.mxu0 0.0
        %1643 = vmatprep.subr.mxu0 0.0
        %1644 = vmatpush1.msra.mxu0 0.0
        %1645 = vmatprep.subr.mxu0 0.0
        %1646 = vmatpush1.msra.mxu0 0.0
        %1647 = vmatprep.subr.mxu0 0.0
        %1648 = vmatpush1.msra.mxu0 0.0
        %1649 = vmatprep.subr.mxu0 0.0
        %1650 = vmatpush1.msra.mxu0 0.0
        %1651 = vmatprep.subr.mxu0 0.0
        %1652 = vmatpush1.msra.mxu0 0.0
        %1653 = vmatprep.subr.mxu0 0.0
        %1654 = vmatpush1.msra.mxu0 0.0
        %1655 = vmatprep.mubr.f32.mxu0 0.0
        %1656 = vmatmul.mubr.f32.gmra.mrb[0].mxu0 %v1589
        %v1657 = vpop.f32.mrb[0].mxu0
        %v1658 = vadd.f32 %v1587, %v1657
        %v1659 = vpop.f32.mrb[0].mxu0
        %1660 = vdwg.mxu0
        %v1661 = vmul.f32 %v1658, 0.5
        %v1662 = vmul.f32 %v1658, 0.70710677
        %v1663 = verf.f32.pop %v1662
        %v1664 = vadd.f32 %v1663, 1.0
        %v1665 = vmul.f32 %v1661, %v1664
        %v1666 = vld [vmem:[%s4] sm:$0xff]
        %v1667 = vld [vmem:[%s4 + $0x8] sm:$0xff]
        %v1668 = vld [vmem:[%s4 + $0x10] sm:$0xff]
        %v1669 = vld [vmem:[%s4 + $0x18] sm:$0xff]
        %v1670 = vld [vmem:[%s4 + $0x20] sm:$0xff]
        %v1671 = vld [vmem:[%s4 + $0x28] sm:$0xff]
        %v1672 = vld [vmem:[%s4 + $0x30] sm:$0xff]
        %v1673 = vld [vmem:[%s4 + $0x38] sm:$0xff]
        %v1674 = vld [vmem:[%s5 + $0x2] sm:$0x1]
        %v1675 = vlaneseq
        %v1676 = vshrl.u32 %v1675, 7
        %v1677 = vsub.s32 0, %v1676
        %v1678 = vrot.slane %v1674, %v1677
        %vm1679 = vcmask 523264
        %v1681 = vsel %vm1679, %v1665, 0
        %1683 = vmatprep.subr.mxu0 0.0
        %1684 = vmatpush1.msra.mxu0 %v1666
        %1685 = vmatprep.subr.mxu0 0.0
        %1686 = vmatpush1.msra.mxu0 %v1667
        %1687 = vmatprep.subr.mxu0 0.0
        %1688 = vmatpush1.msra.mxu0 %v1668
        %1689 = vmatprep.subr.mxu0 0.0
        %1690 = vmatpush1.msra.mxu0 %v1669
        %1691 = vmatprep.subr.mxu0 0.0
        %1692 = vmatpush1.msra.mxu0 %v1670
        %1693 = vmatprep.subr.mxu0 0.0
        %1694 = vmatpush1.msra.mxu0 %v1671
        %1695 = vmatprep.subr.mxu0 0.0
        %1696 = vmatpush1.msra.mxu0 %v1672
        %1697 = vmatprep.subr.mxu0 0.0
        %1698 = vmatpush1.msra.mxu0 %v1673
        %1699 = vmatprep.subr.mxu0 0.0
        %1700 = vmatpush1.msra.mxu0 0.0
        %1701 = vmatprep.subr.mxu0 0.0
        %1702 = vmatpush1.msra.mxu0 0.0
        %1703 = vmatprep.subr.mxu0 0.0
        %1704 = vmatpush1.msra.mxu0 0.0
        %1705 = vmatprep.subr.mxu0 0.0
        %1706 = vmatpush1.msra.mxu0 0.0
        %1707 = vmatprep.subr.mxu0 0.0
        %1708 = vmatpush1.msra.mxu0 0.0
        %1709 = vmatprep.subr.mxu0 0.0
        %1710 = vmatpush1.msra.mxu0 0.0
        %1711 = vmatprep.subr.mxu0 0.0
        %1712 = vmatpush1.msra.mxu0 0.0
        %1713 = vmatprep.subr.mxu0 0.0
        %1714 = vmatpush1.msra.mxu0 0.0
        %1715 = vmatprep.subr.mxu0 0.0
        %1716 = vmatpush1.msra.mxu0 0.0
        %1717 = vmatprep.subr.mxu0 0.0
        %1718 = vmatpush1.msra.mxu0 0.0
        %1719 = vmatprep.subr.mxu0 0.0
        %1720 = vmatpush1.msra.mxu0 0.0
        %1721 = vmatprep.subr.mxu0 0.0
        %1722 = vmatpush1.msra.mxu0 0.0
        %1723 = vmatprep.subr.mxu0 0.0
        %1724 = vmatpush1.msra.mxu0 0.0
        %1725 = vmatprep.subr.mxu0 0.0
        %1726 = vmatpush1.msra.mxu0 0.0
        %1727 = vmatprep.subr.mxu0 0.0
        %1728 = vmatpush1.msra.mxu0 0.0
        %1729 = vmatprep.subr.mxu0 0.0
        %1730 = vmatpush1.msra.mxu0 0.0
        %1731 = vmatprep.subr.mxu0 0.0
        %1732 = vmatpush1.msra.mxu0 0.0
        %1733 = vmatprep.subr.mxu0 0.0
        %1734 = vmatpush1.msra.mxu0 0.0
        %1735 = vmatprep.subr.mxu0 0.0
        %1736 = vmatpush1.msra.mxu0 0.0
        %1737 = vmatprep.subr.mxu0 0.0
        %1738 = vmatpush1.msra.mxu0 0.0
        %1739 = vmatprep.subr.mxu0 0.0
        %1740 = vmatpush1.msra.mxu0 0.0
        %1741 = vmatprep.subr.mxu0 0.0
        %1742 = vmatpush1.msra.mxu0 0.0
        %1743 = vmatprep.subr.mxu0 0.0
        %1744 = vmatpush1.msra.mxu0 0.0
        %1745 = vmatprep.subr.mxu0 0.0
        %1746 = vmatpush1.msra.mxu0 0.0
        %1747 = vmatprep.mubr.f32.mxu0 0.0
        %1748 = vmatmul.mubr.f32.gmra.mrb[0].mxu0 %v1681
        %v1749 = vpop.f32.mrb[0].mxu0
        %v1750 = vadd.f32 %v1678, %v1749
        %v1751 = vpop.f32.mrb[0].mxu0
        %1752 = vdwg.mxu0
        %v1753 = vadd.f32 %v1578, %v1750
        %v1754 = vsel %vm306, %v1753, 0.0
        %1755 = vadd.xlane.f32.xlu0 %v1754
        %v1756 = vpop.xlane.xlu0 %1755
        %v1757 = vmul.f32 %v1756, %v1556
        %v1758 = vsub.f32 %v1753, %v1757
        %v1759 = vmul.f32 %v1758, %v1758
        %v1760 = vsel %vm306, %v1759, 0.0
        %1761 = vadd.xlane.f32.xlu0 %v1760
        %v1762 = vpop.xlane.xlu0 %1761
        %v1763 = vmul.f32 %v1762, %v1556
        %v1764 = vadd.f32 %v1763, 1e-05
        %v1765 = vrsqrt.pop %v1764
        %v1766 = vmul.f32 %v1758, %v1765
        %v1767 = vld [vmem:[%s5 + $0x5] sm:$0x1]
        %v1768 = vlaneseq
        %v1769 = vshrl.u32 %v1768, 7
        %v1770 = vsub.s32 0, %v1769
        %v1771 = vrot.slane %v1767, %v1770
        %v1772 = vmul.f32 %v1766, %v1771
        %v1773 = vld [vmem:[%s5 + $0x6] sm:$0x1]
        %v1774 = vlaneseq
        %v1775 = vshrl.u32 %v1774, 7
        %v1776 = vsub.s32 0, %v1775
        %v1777 = vrot.slane %v1773, %v1776
        %v1778 = vadd.f32 %v1772, %v1777
        %1779 = vst.msk [vmem:[%s255] sm:$0xff] %vm306, %v1778
        %s1780 = sand.u32 %s164, 1
        %s1781 = scalar_lea.sflag [#allocation3], %s1780
        %s1782 = sand.u32 %s164, 1
        %s1783 = smul.addr %s1782, 8
        %s1784 = scalar_lea.vmem [#allocation2], %s1783
        // Predicated region
        $region45: #{tpu_custom_call.1} parent=43 // pred_check
          %p1785 = pneg %p174
        $region46: #{tpu_custom_call.1} parent=43 // pred_check_branch
          %1787 = sbr.rel (%p1785) target = $region48
        $region47: #{tpu_custom_call.1} parent=43 // pred_region
          %s1789 = ssub.s32 128, 128
          %1790 = vsyncadd %s1781, %s1789
          %s1791 = smul.addr %s20, 128
          %s1792 = scalar_lea.hbm %s6, %s1791
          %s1794 = sshll.u32 %s1784, 4
          %s1795 = int_to_ptr.vmem [resolvable:$true] %s1794
          %1797 = dma.vmem_to_hbm [thread:$0]  %s1795, 128, %s1792, %s1781
        $region48: #{tpu_custom_call.1} parent=43 // pred_fallthru
          _
      $region44: #{tpu_custom_call.1} parent=5 // pred_fallthru
        _
      %p1798 = scmp.le.s32.totalorder 2, %s15
      // Predicated region
      $region49: #{tpu_custom_call.1} parent=5 // pred_check
        %p1799 = pneg %p1798
      $region50: #{tpu_custom_call.1} parent=5 // pred_check_branch
        %1801 = sbr.rel (%p1799) target = $region52
      $region51: #{tpu_custom_call.1} parent=5 // pred_region
        %s1802 = ssub.s32 %s15, 2
        // Predicated region
        $region53: #{tpu_custom_call.1} parent=51 // pred_check
          %p1803 = pneg %p180
        $region54: #{tpu_custom_call.1} parent=51 // pred_check_branch
          %1805 = sbr.rel (%p1803) target = $region56
        $region55: #{tpu_custom_call.1} parent=51 // pred_region
          %s1806 = sand.u32 %s165, 1
          %s1807 = scalar_lea.sflag [#allocation3], %s1806
          %s1808 = sand.u32 %s165, 1
          %s1809 = smul.addr %s1808, 8
          %s1810 = scalar_lea.vmem [#allocation2], %s1809
          %1811 = dma.done %s1807, 128
        $region56: #{tpu_custom_call.1} parent=51 // pred_fallthru
          _
      $region52: #{tpu_custom_call.1} parent=5 // pred_fallthru
        _
    $region6: #{tpu_custom_call.1} parent=1 // loop_footer
      %s19 = sadd.s32 1, %s15
    $region7: #{tpu_custom_call.1} parent=1 // loop_footer_branch
      %14 = sbr.rel target = $region3
    $region8: #{tpu_custom_call.1} parent=1 // loop_exit
      _
    %1812 = vsyncpa [#allocation3], 1
    %s1813 = scalar_lea.sflag [#allocation3], 1
    %1814 = vsyncpa %s1813, 1

</llo_original>
